<compile_context>
chip_gen: v6e
topology: v6e:2x2x1
jax: 0.10.0
libtpu: 0.0.40
codegen_flags: <defaults>
</compile_context>

<pallas_src>
import functools

import jax
import jax.numpy as jnp
import numpy as np
from jax.experimental import pallas as pl
from jax.experimental.pallas import tpu as pltpu

KH = KW = 3          # stand-in trunk conv kernel size
CMID = 16            # stand-in trunk channels (logical)
FEAT_DIM = 1000      # InceptionV3 classifier logits feeding hash_layer
LANE = 128
SUBLANE_BF16 = 16    # bf16 packed sublane tile


def _round_up(x, m):
    return (x + m - 1) // m * m


# ----------------------------------------------------------------------------
# Fused kernel: conv tiles -> pooled-sum accumulator -> fc + hash + tanh epilogue
# ----------------------------------------------------------------------------
def _build_kernel(row_stride, kh, tile):
    def kernel(x_ref, pool_ref, cw_ref, cb_ref, fw_ref, fb_ref, hw_ref, hb_ref,
               o_ref, pooled_acc):
        t = pl.program_id(1)
        n_t = pl.num_programs(1)

        @pl.when(t == 0)
        def _init():
            pooled_acc[...] = jnp.zeros_like(pooled_acc)

        cmid = cw_ref.shape[-1]
        row0 = t * tile

        # 3x3 valid conv for `tile` spatial positions: kh shifted bf16 GEMMs
        # (the KW in-row taps are pre-folded into the channel dim), f32 accum.
        acc = jnp.zeros((tile, cmid), jnp.float32)
        for i in range(kh):           # static unroll -> LLO schedules all 3 dots
            start = pl.multiple_of(row0 + i * row_stride, SUBLANE_BF16)
            xs = x_ref[pl.ds(start, tile), :]                      # (tile, KW*Cin) bf16
            acc += jnp.dot(xs, cw_ref[i], preferred_element_type=jnp.float32)
        h = jnp.maximum(acc + cb_ref[...], 0.0)                    # bias + ReLU (f32, VPU)

        # Masked global-average-pool contribution on the MXU; pool_ref already
        # folds the validity mask (right/bottom garbage rows) and 1/(Ho*Wo).
        pooled_acc[...] += jnp.dot(pool_ref[...], h,
                                   preferred_element_type=jnp.float32)

        # Epilogue on the last spatial tile of this sample:
        # pooled -> Linear(Cmid, 1000) -> hash Linear(1000, code) + Tanh.
        @pl.when(t == n_t - 1)
        def _epilogue():
            pooled = pooled_acc[...].astype(jnp.bfloat16)          # (1, cmid)
            feats = jnp.dot(pooled, fw_ref[...],
                            preferred_element_type=jnp.float32) + fb_ref[...]
            z = jnp.dot(feats.astype(jnp.bfloat16), hw_ref[...],
                        preferred_element_type=jnp.float32) + hb_ref[...]
            o_ref[...] = jnp.tanh(z)

    return kernel


# ----------------------------------------------------------------------------
# Parameters
# ----------------------------------------------------------------------------
def init_params(key, c_in, code_length):
    """Logical (unpadded) parameters mirroring the PyTorch module."""
    k1, k2, k3 = jax.random.split(key, 3)
    conv_w = 0.1 * jax.random.normal(k1, (KH, KW, c_in, CMID), jnp.float32)
    conv_b = jnp.zeros((CMID,), jnp.float32)
    fc_w = 0.05 * jax.random.normal(k2, (CMID, FEAT_DIM), jnp.float32)
    fc_b = jnp.zeros((FEAT_DIM,), jnp.float32)
    # hash_layer: Linear(1000, code_length), xavier_normal_ weight, zero bias.
    xavier_std = float(np.sqrt(2.0 / (FEAT_DIM + code_length)))
    hash_w = xavier_std * jax.random.normal(k3, (FEAT_DIM, code_length), jnp.float32)
    hash_b = jnp.zeros((code_length,), jnp.float32)
    return dict(conv_w=conv_w, conv_b=conv_b, fc_w=fc_w, fc_b=fc_b,
                hash_w=hash_w, hash_b=hash_b)


def prepare_kernel_params(params):
    """Pad channel dims to 128-lane multiples (zero padding -> no leakage into
    real outputs), fold the KW taps into the conv K dim, cast weights to bf16."""
    conv_w, fc_w, hash_w = params["conv_w"], params["fc_w"], params["hash_w"]
    kh, kw, cin, cmid = conv_w.shape
    feat, code = hash_w.shape
    cmid_p = _round_up(cmid, LANE)
    feat_p = _round_up(feat, LANE)
    code_p = _round_up(code, LANE)

    cw = jnp.zeros((kh, kw * cin, cmid_p), jnp.float32)
    cw = cw.at[:, :, :cmid].set(conv_w.reshape(kh, kw * cin, cmid))
    cb = jnp.zeros((1, cmid_p), jnp.float32).at[0, :cmid].set(params["conv_b"])
    fw = jnp.zeros((cmid_p, feat_p), jnp.float32).at[:cmid, :feat].set(fc_w)
    fb = jnp.zeros((1, feat_p), jnp.float32).at[0, :feat].set(params["fc_b"])
    hw = jnp.zeros((feat_p, code_p), jnp.float32).at[:feat, :code].set(hash_w)
    hb = jnp.zeros((1, code_p), jnp.float32).at[0, :code].set(params["hash_b"])
    return dict(conv_w=cw.astype(jnp.bfloat16), conv_b=cb,
                fc_w=fw.astype(jnp.bfloat16), fc_b=fb,
                hash_w=hw.astype(jnp.bfloat16), hash_b=hb)


# ----------------------------------------------------------------------------
# Forward (eval mode): features(x) -> hash_layer(x)
# ----------------------------------------------------------------------------
@functools.partial(jax.jit, static_argnames=("code_length",))
def googlenetv3_forward(x_nchw, kparams, code_length):
    x = jnp.transpose(x_nchw, (0, 2, 3, 1)).astype(jnp.float32)   # NCHW -> NHWC
    n, img_h, img_w, cin = x.shape
    out_h, out_w = img_h - KH + 1, img_w - KW + 1

    # Pad width so per-tap row offsets (i * w_pad) stay 16-sublane aligned
    # (safe for packed bf16 layouts).  Padded columns are masked out of the pool.
    w_pad = _round_up(img_w, SUBLANE_BF16)
    x = jnp.pad(x, ((0, 0), (0, 0), (0, w_pad - img_w), (0, 0)))
    n_pos = img_h * w_pad

    # Spatial positions per grid step (multiple of 16 so every dynamic slice
    # start stays bf16-tile aligned); grow toward 512 at real backbone sizes.
    tile = 128 if n_pos <= 4096 else 512
    n_tiles = -(-n_pos // tile)
    rows = _round_up(n_tiles * tile + (KH - 1) * w_pad + (KW - 1), SUBLANE_BF16)

    # Flatten spatial dims; fold the KW in-row taps into the channel dim.
    x_flat = jnp.pad(x.reshape(n, n_pos, cin),
                     ((0, 0), (0, rows + KW - 1 - n_pos), (0, 0)))
    x_rows = jnp.concatenate([x_flat[:, j:j + rows, :] for j in range(KW)], axis=-1)
    x_rows = x_rows.astype(jnp.bfloat16)                          # (N, rows, KW*Cin)

    # Pooling weights: validity mask (drops right/bottom garbage positions and
    # the tile padding) pre-scaled by 1/(Ho*Wo), so the pool is a single MXU dot.
    p = np.arange(n_tiles * tile)
    valid = ((p // w_pad) < out_h) & ((p % w_pad) < out_w)
    pool_w = jnp.asarray((valid.astype(np.float32) / float(out_h * out_w))[None, :])

    cw, cb = kparams["conv_w"], kparams["conv_b"]
    fw, fb = kparams["fc_w"], kparams["fc_b"]
    hshw, hshb = kparams["hash_w"], kparams["hash_b"]
    cmid_p, feat_p, code_p = cw.shape[-1], fw.shape[-1], hshw.shape[-1]
    kwc = KW * cin

    flops = (2 * n * n_tiles * tile * KH * kwc * cmid_p     # conv GEMMs
             + 2 * n * n_tiles * tile * cmid_p              # pooling dot
             + 2 * n * cmid_p * feat_p                      # fc
             + 2 * n * feat_p * code_p)                     # hash layer
    bytes_accessed = int(sum(a.size * a.dtype.itemsize
                             for a in (x_rows, pool_w, cw, cb, fw, fb, hshw, hshb))
                         + n * code_p * 4)

    kernel = _build_kernel(w_pad, KH, tile)

    out = pl.pallas_call(
        kernel,
        out_shape=jax.ShapeDtypeStruct((n, 1, code_p), jnp.float32),
        grid=(n, n_tiles),
        in_specs=[
            # per-sample flattened image: resident in VMEM across the t loop
            pl.BlockSpec((None, rows, kwc), lambda b, t: (b, 0, 0)),
            # pooling mask tile (lane-dense, 128-wide chunks)
            pl.BlockSpec((1, tile), lambda b, t: (0, t)),
            # weights / biases: whole-array blocks, DMA'd once and kept resident
            pl.BlockSpec(cw.shape, lambda b, t: (0, 0, 0)),
            pl.BlockSpec(cb.shape, lambda b, t: (0, 0)),
            pl.BlockSpec(fw.shape, lambda b, t: (0, 0)),
            pl.BlockSpec(fb.shape, lambda b, t: (0, 0)),
            pl.BlockSpec(hshw.shape, lambda b, t: (0, 0)),
            pl.BlockSpec(hshb.shape, lambda b, t: (0, 0)),
        ],
        out_specs=pl.BlockSpec((None, 1, code_p), lambda b, t: (b, 0, 0)),
        scratch_shapes=[pltpu.VMEM((1, cmid_p), jnp.float32)],    # pooled-sum accumulator
        compiler_params=pltpu.CompilerParams(
            dimension_semantics=("parallel", "arbitrary"),
            vmem_limit_bytes=32 * 1024 * 1024),
        cost_estimate=pl.CostEstimate(flops=flops,
                                      transcendentals=n * code_p,
                                      bytes_accessed=bytes_accessed),
    )(x_rows, pool_w, cw, cb, fw, fb, hshw, hshb)

    return out.reshape(n, code_p)[:, :code_length]


# ----------------------------------------------------------------------------
# Pure-JAX reference with the same bf16-feed / f32-accumulate cast points
# ----------------------------------------------------------------------------
def reference_forward(x_nchw, params):
    bf16, f32 = jnp.bfloat16, jnp.float32
    x = jnp.transpose(x_nchw, (0, 2, 3, 1)).astype(f32)
    h = jax.lax.conv_general_dilated(
        x.astype(bf16), params["conv_w"].astype(bf16), (1, 1), "VALID",
        dimension_numbers=("NHWC", "HWIO", "NHWC"),
        preferred_element_type=f32)
    h = jnp.maximum(h + params["conv_b"], 0.0)
    pooled = jnp.mean(h, axis=(1, 2))
    feats = jnp.dot(pooled.astype(bf16), params["fc_w"].astype(bf16),
                    preferred_element_type=f32) + params["fc_b"]
    z = jnp.dot(feats.astype(bf16), params["hash_w"].astype(bf16),
                preferred_element_type=f32) + params["hash_b"]
    return jnp.tanh(z)


if __name__ == "__main__":
    # small shapes consistent with the forward: image batch (N, C, H, W)
    N, C_IN, H, W = 2, 4, 16, 16
    CODE_LENGTH = 32

    key = jax.random.PRNGKey(0)
    kx, kp = jax.random.split(key)
    x = jax.random.normal(kx, (N, C_IN, H, W), jnp.float32)
    params = init_params(kp, C_IN, CODE_LENGTH)
    kparams = prepare_kernel_params(params)

    out = googlenetv3_forward(x, kparams, CODE_LENGTH)
    out = jax.block_until_ready(out)

    ref = jax.block_until_ready(reference_forward(x, params))
    assert out.shape == (N, CODE_LENGTH), out.shape
    err = float(np.max(np.abs(np.asarray(out) - np.asarray(ref))))
    assert np.allclose(np.asarray(out), np.asarray(ref), atol=2e-2, rtol=2e-2), err

    print("KERNEL_OK")
</pallas_src>

<mosaic_0001>
module attributes {stable_mosaic.version = 11 : i64} {
  func.func @kernel(%arg0: i32, %arg1: i32, %arg2: memref<1x304x12xbf16, #tpu.memory_space<vmem>>, %arg3: memref<1x128xf32, #tpu.memory_space<vmem>>, %arg4: memref<3x12x128xbf16, #tpu.memory_space<vmem>>, %arg5: memref<1x128xf32, #tpu.memory_space<vmem>>, %arg6: memref<128x1024xbf16, #tpu.memory_space<vmem>>, %arg7: memref<1x1024xf32, #tpu.memory_space<vmem>>, %arg8: memref<1024x128xbf16, #tpu.memory_space<vmem>>, %arg9: memref<1x128xf32, #tpu.memory_space<vmem>>, %arg10: memref<1x1x128xf32, #tpu.memory_space<vmem>>, %arg11: memref<1x128xf32, #tpu.memory_space<vmem>>) attributes {dimension_semantics = [#tpu.dimension_semantics<parallel>, #tpu.dimension_semantics<arbitrary>], iteration_bounds = array<i64: 2, 2>, scalar_prefetch = 0 : i64, scratch_operands = 1 : i64, tpu.core_type = #tpu.core_type<tc>, window_params = [{transform_indices = @transform_0, window_bounds = array<i64: 1, 304, 12>}, {transform_indices = @transform_1, window_bounds = array<i64: 1, 128>}, {pipeline_mode = #tpu.pipeline_mode<synchronous>, transform_indices = @transform_2, window_bounds = array<i64: 3, 12, 128>}, {pipeline_mode = #tpu.pipeline_mode<synchronous>, transform_indices = @transform_3, window_bounds = array<i64: 1, 128>}, {pipeline_mode = #tpu.pipeline_mode<synchronous>, transform_indices = @transform_4, window_bounds = array<i64: 128, 1024>}, {pipeline_mode = #tpu.pipeline_mode<synchronous>, transform_indices = @transform_5, window_bounds = array<i64: 1, 1024>}, {pipeline_mode = #tpu.pipeline_mode<synchronous>, transform_indices = @transform_6, window_bounds = array<i64: 1024, 128>}, {pipeline_mode = #tpu.pipeline_mode<synchronous>, transform_indices = @transform_7, window_bounds = array<i64: 1, 128>}, {transform_indices = @transform_8, window_bounds = array<i64: 1, 1, 128>}]} {
    %c0_i32 = arith.constant 0 : i32
    %0 = arith.cmpi eq, %arg1, %c0_i32 : i32
    %1 = arith.extui %0 : i1 to i32
    %c0_i32_0 = arith.constant 0 : i32
    %2 = arith.cmpi ne, %1, %c0_i32_0 : i32
    scf.if %2 {
      %cst_28 = arith.constant 0.000000e+00 : f32
      %45 = vector.broadcast %cst_28 : f32 to vector<1x128xf32>
      %c0_29 = arith.constant 0 : index
      %c0_30 = arith.constant 0 : index
      %46 = vector.load %arg11[%c0_29, %c0_30] : memref<1x128xf32, #tpu.memory_space<vmem>>, vector<1x128xf32>
      tpu.vector_store %arg11[%c0_29, %c0_30], %45 {strides = array<i32>} : memref<1x128xf32, #tpu.memory_space<vmem>>, vector<1x128xf32>,
    } else {
    }
    %c128_i32 = arith.constant 128 : i32
    %3 = arith.muli %arg1, %c128_i32 : i32
    %cst = arith.constant 0.000000e+00 : f32
    %4 = vector.broadcast %cst : f32 to vector<128x128xf32>
    %c0_i32_1 = arith.constant 0 : i32
    %5 = arith.addi %3, %c0_i32_1 : i32
    %6 = tpu.assume_multiple %5, 16 : i32
    %c0 = arith.constant 0 : index
    %7 = arith.index_cast %6 : i32 to index
    %c0_2 = arith.constant 0 : index
    %8 = vector.load %arg2[%c0, %7, %c0_2] : memref<1x304x12xbf16, #tpu.memory_space<vmem>>, vector<1x128x12xbf16>
    %9 = vector.shape_cast %8 : vector<1x128x12xbf16> to vector<128x12xbf16>
    %c0_3 = arith.constant 0 : index
    %c0_4 = arith.constant 0 : index
    %c0_5 = arith.constant 0 : index
    %10 = vector.load %arg4[%c0_3, %c0_4, %c0_5] : memref<3x12x128xbf16, #tpu.memory_space<vmem>>, vector<1x12x128xbf16>
    %11 = vector.shape_cast %10 : vector<1x12x128xbf16> to vector<12x128xbf16>
    %cst_6 = arith.constant dense<0.000000e+00> : vector<128x128xf32>
    %12 = tpu.matmul %9, %11, %cst_6 {dimension_numbers = #tpu.dot_dimension_numbers<[1], [0], [0], [1], [0, 0, 1, 1], [], []>} : vector<128x12xbf16>, vector<12x128xbf16>, vector<128x128xf32> -> vector<128x128xf32>
    %13 = arith.addf %4, %12 : vector<128x128xf32>
    %c16_i32 = arith.constant 16 : i32
    %14 = arith.addi %3, %c16_i32 : i32
    %15 = tpu.assume_multiple %14, 16 : i32
    %c0_7 = arith.constant 0 : index
    %16 = arith.index_cast %15 : i32 to index
    %c0_8 = arith.constant 0 : index
    %17 = vector.load %arg2[%c0_7, %16, %c0_8] : memref<1x304x12xbf16, #tpu.memory_space<vmem>>, vector<1x128x12xbf16>
    %18 = vector.shape_cast %17 : vector<1x128x12xbf16> to vector<128x12xbf16>
    %c1 = arith.constant 1 : index
    %c0_9 = arith.constant 0 : index
    %c0_10 = arith.constant 0 : index
    %19 = vector.load %arg4[%c1, %c0_9, %c0_10] : memref<3x12x128xbf16, #tpu.memory_space<vmem>>, vector<1x12x128xbf16>
    %20 = vector.shape_cast %19 : vector<1x12x128xbf16> to vector<12x128xbf16>
    %cst_11 = arith.constant dense<0.000000e+00> : vector<128x128xf32>
    %21 = tpu.matmul %18, %20, %cst_11 {dimension_numbers = #tpu.dot_dimension_numbers<[1], [0], [0], [1], [0, 0, 1, 1], [], []>} : vector<128x12xbf16>, vector<12x128xbf16>, vector<128x128xf32> -> vector<128x128xf32>
    %22 = arith.addf %13, %21 : vector<128x128xf32>
    %c32_i32 = arith.constant 32 : i32
    %23 = arith.addi %3, %c32_i32 : i32
    %24 = tpu.assume_multiple %23, 16 : i32
    %c0_12 = arith.constant 0 : index
    %25 = arith.index_cast %24 : i32 to index
    %c0_13 = arith.constant 0 : index
    %26 = vector.load %arg2[%c0_12, %25, %c0_13] : memref<1x304x12xbf16, #tpu.memory_space<vmem>>, vector<1x128x12xbf16>
    %27 = vector.shape_cast %26 : vector<1x128x12xbf16> to vector<128x12xbf16>
    %c2 = arith.constant 2 : index
    %c0_14 = arith.constant 0 : index
    %c0_15 = arith.constant 0 : index
    %28 = vector.load %arg4[%c2, %c0_14, %c0_15] : memref<3x12x128xbf16, #tpu.memory_space<vmem>>, vector<1x12x128xbf16>
    %29 = vector.shape_cast %28 : vector<1x12x128xbf16> to vector<12x128xbf16>
    %cst_16 = arith.constant dense<0.000000e+00> : vector<128x128xf32>
    %30 = tpu.matmul %27, %29, %cst_16 {dimension_numbers = #tpu.dot_dimension_numbers<[1], [0], [0], [1], [0, 0, 1, 1], [], []>} : vector<128x12xbf16>, vector<12x128xbf16>, vector<128x128xf32> -> vector<128x128xf32>
    %31 = arith.addf %22, %30 : vector<128x128xf32>
    %c0_17 = arith.constant 0 : index
    %c0_18 = arith.constant 0 : index
    %32 = vector.load %arg5[%c0_17, %c0_18] : memref<1x128xf32, #tpu.memory_space<vmem>>, vector<1x128xf32>
    %33 = vector.broadcast %32 : vector<1x128xf32> to vector<128x128xf32>
    %34 = arith.addf %31, %33 : vector<128x128xf32>
    %cst_19 = arith.constant 0.000000e+00 : f32
    %35 = vector.broadcast %cst_19 : f32 to vector<128x128xf32>
    %36 = arith.maximumf %34, %35 : vector<128x128xf32>
    %c0_20 = arith.constant 0 : index
    %c0_21 = arith.constant 0 : index
    %37 = vector.load %arg11[%c0_20, %c0_21] : memref<1x128xf32, #tpu.memory_space<vmem>>, vector<1x128xf32>
    %c0_22 = arith.constant 0 : index
    %c0_23 = arith.constant 0 : index
    %38 = vector.load %arg3[%c0_22, %c0_23] : memref<1x128xf32, #tpu.memory_space<vmem>>, vector<1x128xf32>
    %cst_24 = arith.constant dense<0.000000e+00> : vector<1x128xf32>
    %39 = tpu.matmul %38, %36, %cst_24 {dimension_numbers = #tpu.dot_dimension_numbers<[1], [0], [0], [1], [0, 0, 1, 1], [], []>} : vector<1x128xf32>, vector<128x128xf32>, vector<1x128xf32> -> vector<1x128xf32>
    %40 = arith.addf %37, %39 : vector<1x128xf32>
    %c0_25 = arith.constant 0 : index
    %c0_26 = arith.constant 0 : index
    %41 = vector.load %arg11[%c0_25, %c0_26] : memref<1x128xf32, #tpu.memory_space<vmem>>, vector<1x128xf32>
    tpu.vector_store %arg11[%c0_25, %c0_26], %40 {strides = array<i32>} : memref<1x128xf32, #tpu.memory_space<vmem>>, vector<1x128xf32>,
    %c1_i32 = arith.constant 1 : i32
    %42 = arith.cmpi eq, %arg1, %c1_i32 : i32
    %43 = arith.extui %42 : i1 to i32
    %c0_i32_27 = arith.constant 0 : i32
    %44 = arith.cmpi ne, %43, %c0_i32_27 : i32
    scf.if %44 {
      %c0_28 = arith.constant 0 : index
      %c0_29 = arith.constant 0 : index
      %45 = vector.load %arg11[%c0_28, %c0_29] : memref<1x128xf32, #tpu.memory_space<vmem>>, vector<1x128xf32>
      %46 = arith.truncf %45 : vector<1x128xf32> to vector<1x128xbf16>
      %c0_30 = arith.constant 0 : index
      %c0_31 = arith.constant 0 : index
      %47 = vector.load %arg6[%c0_30, %c0_31] : memref<128x1024xbf16, #tpu.memory_space<vmem>>, vector<128x1024xbf16>
      %cst_32 = arith.constant dense<0.000000e+00> : vector<1x1024xf32>
      %48 = tpu.matmul %46, %47, %cst_32 {dimension_numbers = #tpu.dot_dimension_numbers<[1], [0], [0], [1], [0, 0, 1, 1], [], []>} : vector<1x128xbf16>, vector<128x1024xbf16>, vector<1x1024xf32> -> vector<1x1024xf32>
      %c0_33 = arith.constant 0 : index
      %c0_34 = arith.constant 0 : index
      %49 = vector.load %arg7[%c0_33, %c0_34] : memref<1x1024xf32, #tpu.memory_space<vmem>>, vector<1x1024xf32>
      %50 = arith.addf %48, %49 : vector<1x1024xf32>
      %51 = arith.truncf %50 : vector<1x1024xf32> to vector<1x1024xbf16>
      %c0_35 = arith.constant 0 : index
      %c0_36 = arith.constant 0 : index
      %52 = vector.load %arg8[%c0_35, %c0_36] : memref<1024x128xbf16, #tpu.memory_space<vmem>>, vector<1024x128xbf16>
      %cst_37 = arith.constant dense<0.000000e+00> : vector<1x128xf32>
      %53 = tpu.matmul %51, %52, %cst_37 {dimension_numbers = #tpu.dot_dimension_numbers<[1], [0], [0], [1], [0, 0, 1, 1], [], []>} : vector<1x1024xbf16>, vector<1024x128xbf16>, vector<1x128xf32> -> vector<1x128xf32>
      %c0_38 = arith.constant 0 : index
      %c0_39 = arith.constant 0 : index
      %54 = vector.load %arg9[%c0_38, %c0_39] : memref<1x128xf32, #tpu.memory_space<vmem>>, vector<1x128xf32>
      %55 = arith.addf %53, %54 : vector<1x128xf32>
      %56 = math.tanh %55 : vector<1x128xf32>
      %c0_40 = arith.constant 0 : index
      %c0_41 = arith.constant 0 : index
      %c0_42 = arith.constant 0 : index
      %57 = vector.load %arg10[%c0_40, %c0_41, %c0_42] : memref<1x1x128xf32, #tpu.memory_space<vmem>>, vector<1x1x128xf32>
      %58 = vector.shape_cast %57 : vector<1x1x128xf32> to vector<1x128xf32>
      %59 = vector.shape_cast %56 : vector<1x128xf32> to vector<1x1x128xf32>
      tpu.vector_store %arg10[%c0_40, %c0_41, %c0_42], %59 {strides = array<i32>} : memref<1x1x128xf32, #tpu.memory_space<vmem>>, vector<1x1x128xf32>,
    } else {
    }
    return
  }
  func.func @transform_0(%arg0: i32, %arg1: i32) -> (i32, i32, i32) {
    %c0_i32 = arith.constant 0 : i32
    %c0_i32_0 = arith.constant 0 : i32
    %c0_i32_1 = arith.constant 0 : i32
    return %arg0, %c0_i32, %c0_i32_0 : i32, i32, i32
  }
  func.func @transform_1(%arg0: i32, %arg1: i32) -> (i32, i32) {
    %c0_i32 = arith.constant 0 : i32
    %c0_i32_0 = arith.constant 0 : i32
    return %c0_i32, %arg1 : i32, i32
  }
  func.func @transform_2(%arg0: i32, %arg1: i32) -> (i32, i32, i32) {
    %c0_i32 = arith.constant 0 : i32
    %c0_i32_0 = arith.constant 0 : i32
    %c0_i32_1 = arith.constant 0 : i32
    %c0_i32_2 = arith.constant 0 : i32
    return %c0_i32, %c0_i32_0, %c0_i32_1 : i32, i32, i32
  }
  func.func @transform_3(%arg0: i32, %arg1: i32) -> (i32, i32) {
    %c0_i32 = arith.constant 0 : i32
    %c0_i32_0 = arith.constant 0 : i32
    %c0_i32_1 = arith.constant 0 : i32
    return %c0_i32, %c0_i32_0 : i32, i32
  }
  func.func @transform_4(%arg0: i32, %arg1: i32) -> (i32, i32) {
    %c0_i32 = arith.constant 0 : i32
    %c0_i32_0 = arith.constant 0 : i32
    %c0_i32_1 = arith.constant 0 : i32
    return %c0_i32, %c0_i32_0 : i32, i32
  }
  func.func @transform_5(%arg0: i32, %arg1: i32) -> (i32, i32) {
    %c0_i32 = arith.constant 0 : i32
    %c0_i32_0 = arith.constant 0 : i32
    %c0_i32_1 = arith.constant 0 : i32
    return %c0_i32, %c0_i32_0 : i32, i32
  }
  func.func @transform_6(%arg0: i32, %arg1: i32) -> (i32, i32) {
    %c0_i32 = arith.constant 0 : i32
    %c0_i32_0 = arith.constant 0 : i32
    %c0_i32_1 = arith.constant 0 : i32
    return %c0_i32, %c0_i32_0 : i32, i32
  }
  func.func @transform_7(%arg0: i32, %arg1: i32) -> (i32, i32) {
    %c0_i32 = arith.constant 0 : i32
    %c0_i32_0 = arith.constant 0 : i32
    %c0_i32_1 = arith.constant 0 : i32
    return %c0_i32, %c0_i32_0 : i32, i32
  }
  func.func @transform_8(%arg0: i32, %arg1: i32) -> (i32, i32, i32) {
    %c0_i32 = arith.constant 0 : i32
    %c0_i32_0 = arith.constant 0 : i32
    %c0_i32_1 = arith.constant 0 : i32
    return %arg0, %c0_i32, %c0_i32_0 : i32, i32, i32
  }
}

</mosaic_0001>

<llo_original>
// kernel: googlenetv3_forward.1
$region0: #{googlenetv3_forward.1}
  #allocation0 [shape = 'u32[]', space=smem, size = 0x4, offset = 0x4, fixed_abs, tag = 'smem constant byte address 0x4 - core index']
  #allocation1 [shape = 'u32[144,128]{1,0:T(1,128)}', space=vmem, size = 0x12000, scoped, tag = 'internal scratch']
  #allocation2 [shape = 'f32[1,128]{1,0:T(1,128)}', space=vmem, size = 0x200, scoped, tag = 'scratch operand']
  %s0 = inlined_call_operand.vmem [shape: bf16[2,304,12], index: 0, kind: input, shape index: {}]
  %s1 = inlined_call_operand.vmem [shape: f32[1,256], index: 1, kind: input, shape index: {}]
  %s2 = inlined_call_operand.vmem [shape: bf16[3,12,128], index: 2, kind: input, shape index: {}]
  %s3 = inlined_call_operand.vmem [shape: f32[1,128], index: 3, kind: input, shape index: {}]
  %s4 = inlined_call_operand.vmem [shape: bf16[128,1024], index: 4, kind: input, shape index: {}]
  %s5 = inlined_call_operand.vmem [shape: f32[1,1024], index: 5, kind: input, shape index: {}]
  %s6 = inlined_call_operand.hbm [shape: bf16[1024,128], index: 6, kind: input, shape index: {}]
  %s7 = inlined_call_operand.vmem [shape: f32[1,128], index: 7, kind: input, shape index: {}]
  %s8 = inlined_call_operand.hbm [shape: f32[2,1,128], index: 8, kind: output, shape index: {}]
  %s9 = sld [smem:[#allocation0]]
  $region77: #{googlenetv3_forward.1} parent=0
    _
  %s11 = ssub.s32 1, %s9
  %s12 = scalar_select 0, %s11, %s9
  $region1: #{googlenetv3_forward.1} parent=0
    #allocation3 [shape = 'u8[262144]{0}', space=vmem, size = 0x40000, scoped, tag = 'input window, operand 6, single buffered']
    #allocation4 [shape = 's32[2]{0}', space=sflag, size = 0x8, scoped, tag = 'scoped memory for googlenetv3_forward.1']
    #allocation5 [shape = 's32[2]{0}', space=sflag, size = 0x8, scoped, tag = 'scoped memory for googlenetv3_forward.1']
    #allocation6 [shape = 'u8[1024]{0}', space=vmem, size = 0x400, scoped, tag = 'output window, operand 0']
    %13 = vsyncpa [#allocation4], 0
    %14 = vsyncpa [#allocation5], 0
    %s15 = scalar_lea.sflag [#allocation5], 1
    %16 = vsyncpa %s15, 0
    loop: start=0, step=1, limit=6
    $region2: #{googlenetv3_forward.1} parent=1 // loop_pre_header
      _
    $region3: #{googlenetv3_forward.1} parent=1 // loop_header
      %s18 = sphi 0, %s22
      %p19 = scmp.ge.s32.totalorder %s18, 6
      %s25 = sphi 0, %s37
      %s26 = sphi 0, %s33
      %s27 = sphi 0, %s25
      %s28 = sphi 0, %s26
      %s29 = sphi 0, %s27
      %s30 = sphi 0, %s28
      %s40 = sphi 0, %s42
      %s43 = sphi 0, %s40
      %s44 = sphi 0, %s43
      %s60 = sphi 0, %s44
      %s66 = sphi 0, %s68
      %s69 = sphi 0, %s66
      %s70 = sphi 0, %s69
      %s86 = sphi 0, %s70
      %s90 = sphi 0, %s90
      %s92 = sphi 0, %s90
      %s93 = sphi 0, %s92
      %s107 = sphi 0, %s93
      %s111 = sphi 0, %s111
      %s113 = sphi 0, %s111
      %s114 = sphi 0, %s113
      %s128 = sphi 0, %s114
      %s132 = sphi 0, %s132
      %s134 = sphi 0, %s132
      %s135 = sphi 0, %s134
      %s149 = sphi 0, %s135
      %s153 = sphi 0, %s153
      %s155 = sphi 0, %s153
      %s156 = sphi 0, %s155
      %s170 = sphi 0, %s156
      %s174 = sphi 0, %s174
      %s176 = sphi 0, %s174
      %s177 = sphi 0, %s176
      %s191 = sphi 0, %s177
      %s195 = sphi 0, %s195
      %s197 = sphi 0, %s195
      %s198 = sphi 0, %s197
      %s212 = sphi 0, %s198
      %s218 = sphi 0, %s220
      %s221 = sphi 0, %s218
      %s222 = sphi 0, %s221
      %s238 = sphi 0, %s222
    $region4: #{googlenetv3_forward.1} parent=1 // loop_header_branch
      %21 = sbr.rel (%p19) target = $region8
    $region5: #{googlenetv3_forward.1} parent=1 // loop_body
      %s23 = ssub.s32 %s18, 1
      %s24 = ssub.s32 %s18, 2
      %s31 = sadd.s32 1, %s26
      %p32 = scmp.ge.s32.totalorder %s31, 2
      %s33 = scalar_select %p32, 0, %s31
      %s34 = sadd.s32 1, %s25
      %s35 = scalar_select %p32, %s34, %s25
      %p36 = scmp.ge.s32.totalorder %s35, 2
      %s37 = scalar_select %p36, 0, %s35
      %s38 = ssub.s32 %s25, %s37
      %p39 = scmp.eq.s32.totalorder %s38, 0
      %s41 = sadd.s32 %s40, 1
      %s42 = scalar_select %p39, %s40, %s41
      %p45 = pneg %p39
      %p46 = scmp.eq.s32.totalorder %s18, 3
      %p47 = por %p45, %p46
      %p48 = scmp.ne.s32.totalorder %s40, %s43
      %p49 = scmp.eq.s32.totalorder %s18, 0
      %p50 = por %p48, %p49
      %p51 = scmp.ne.s32.totalorder %s40, %s43
      %p52 = scmp.eq.s32.totalorder %s23, 3
      %p53 = por %p51, %p52
      %p54 = scmp.ne.s32.totalorder %s43, %s44
      %p55 = scmp.eq.s32.totalorder %s23, 0
      %p56 = por %p54, %p55
      %p57 = scmp.ne.s32.totalorder %s43, %s44
      %p58 = scmp.eq.s32.totalorder %s24, 3
      %p59 = por %p57, %p58
      %p61 = scmp.ne.s32.totalorder %s44, %s60
      %p62 = scmp.eq.s32.totalorder %s24, 0
      %p63 = por %p61, %p62
      %s64 = ssub.s32 %s26, %s33
      %p65 = scmp.eq.s32.totalorder %s64, 0
      %s67 = sadd.s32 %s66, 1
      %s68 = scalar_select %p65, %s66, %s67
      %p71 = pneg %p65
      %p72 = scmp.eq.s32.totalorder %s18, 3
      %p73 = por %p71, %p72
      %p74 = scmp.ne.s32.totalorder %s66, %s69
      %p75 = scmp.eq.s32.totalorder %s18, 0
      %p76 = por %p74, %p75
      %p77 = scmp.ne.s32.totalorder %s66, %s69
      %p78 = scmp.eq.s32.totalorder %s23, 3
      %p79 = por %p77, %p78
      %p80 = scmp.ne.s32.totalorder %s69, %s70
      %p81 = scmp.eq.s32.totalorder %s23, 0
      %p82 = por %p80, %p81
      %p83 = scmp.ne.s32.totalorder %s69, %s70
      %p84 = scmp.eq.s32.totalorder %s24, 3
      %p85 = por %p83, %p84
      %p87 = scmp.ne.s32.totalorder %s70, %s86
      %p88 = scmp.eq.s32.totalorder %s24, 0
      %p89 = por %p87, %p88
      %s91 = sadd.s32 %s90, 1
      %p94 = scmp.eq.s32.totalorder %s18, 3
      %p95 = scmp.ne.s32.totalorder %s90, %s92
      %p96 = scmp.eq.s32.totalorder %s18, 0
      %p97 = por %p95, %p96
      %p98 = scmp.ne.s32.totalorder %s90, %s92
      %p99 = scmp.eq.s32.totalorder %s23, 3
      %p100 = por %p98, %p99
      %p101 = scmp.ne.s32.totalorder %s92, %s93
      %p102 = scmp.eq.s32.totalorder %s23, 0
      %p103 = por %p101, %p102
      %p104 = scmp.ne.s32.totalorder %s92, %s93
      %p105 = scmp.eq.s32.totalorder %s24, 3
      %p106 = por %p104, %p105
      %p108 = scmp.ne.s32.totalorder %s93, %s107
      %p109 = scmp.eq.s32.totalorder %s24, 0
      %p110 = por %p108, %p109
      %s112 = sadd.s32 %s111, 1
      %p115 = scmp.eq.s32.totalorder %s18, 3
      %p116 = scmp.ne.s32.totalorder %s111, %s113
      %p117 = scmp.eq.s32.totalorder %s18, 0
      %p118 = por %p116, %p117
      %p119 = scmp.ne.s32.totalorder %s111, %s113
      %p120 = scmp.eq.s32.totalorder %s23, 3
      %p121 = por %p119, %p120
      %p122 = scmp.ne.s32.totalorder %s113, %s114
      %p123 = scmp.eq.s32.totalorder %s23, 0
      %p124 = por %p122, %p123
      %p125 = scmp.ne.s32.totalorder %s113, %s114
      %p126 = scmp.eq.s32.totalorder %s24, 3
      %p127 = por %p125, %p126
      %p129 = scmp.ne.s32.totalorder %s114, %s128
      %p130 = scmp.eq.s32.totalorder %s24, 0
      %p131 = por %p129, %p130
      %s133 = sadd.s32 %s132, 1
      %p136 = scmp.eq.s32.totalorder %s18, 3
      %p137 = scmp.ne.s32.totalorder %s132, %s134
      %p138 = scmp.eq.s32.totalorder %s18, 0
      %p139 = por %p137, %p138
      %p140 = scmp.ne.s32.totalorder %s132, %s134
      %p141 = scmp.eq.s32.totalorder %s23, 3
      %p142 = por %p140, %p141
      %p143 = scmp.ne.s32.totalorder %s134, %s135
      %p144 = scmp.eq.s32.totalorder %s23, 0
      %p145 = por %p143, %p144
      %p146 = scmp.ne.s32.totalorder %s134, %s135
      %p147 = scmp.eq.s32.totalorder %s24, 3
      %p148 = por %p146, %p147
      %p150 = scmp.ne.s32.totalorder %s135, %s149
      %p151 = scmp.eq.s32.totalorder %s24, 0
      %p152 = por %p150, %p151
      %s154 = sadd.s32 %s153, 1
      %p157 = scmp.eq.s32.totalorder %s18, 3
      %p158 = scmp.ne.s32.totalorder %s153, %s155
      %p159 = scmp.eq.s32.totalorder %s18, 0
      %p160 = por %p158, %p159
      %p161 = scmp.ne.s32.totalorder %s153, %s155
      %p162 = scmp.eq.s32.totalorder %s23, 3
      %p163 = por %p161, %p162
      %p164 = scmp.ne.s32.totalorder %s155, %s156
      %p165 = scmp.eq.s32.totalorder %s23, 0
      %p166 = por %p164, %p165
      %p167 = scmp.ne.s32.totalorder %s155, %s156
      %p168 = scmp.eq.s32.totalorder %s24, 3
      %p169 = por %p167, %p168
      %p171 = scmp.ne.s32.totalorder %s156, %s170
      %p172 = scmp.eq.s32.totalorder %s24, 0
      %p173 = por %p171, %p172
      %s175 = sadd.s32 %s174, 1
      %p178 = scmp.eq.s32.totalorder %s18, 3
      %p179 = scmp.ne.s32.totalorder %s174, %s176
      %p180 = scmp.eq.s32.totalorder %s18, 0
      %p181 = por %p179, %p180
      %p182 = scmp.ne.s32.totalorder %s174, %s176
      %p183 = scmp.eq.s32.totalorder %s23, 3
      %p184 = por %p182, %p183
      %p185 = scmp.ne.s32.totalorder %s176, %s177
      %p186 = scmp.eq.s32.totalorder %s23, 0
      %p187 = por %p185, %p186
      %p188 = scmp.ne.s32.totalorder %s176, %s177
      %p189 = scmp.eq.s32.totalorder %s24, 3
      %p190 = por %p188, %p189
      %p192 = scmp.ne.s32.totalorder %s177, %s191
      %p193 = scmp.eq.s32.totalorder %s24, 0
      %p194 = por %p192, %p193
      %s196 = sadd.s32 %s195, 1
      %p199 = scmp.eq.s32.totalorder %s18, 3
      %p200 = scmp.ne.s32.totalorder %s195, %s197
      %p201 = scmp.eq.s32.totalorder %s18, 0
      %p202 = por %p200, %p201
      %p203 = scmp.ne.s32.totalorder %s195, %s197
      %p204 = scmp.eq.s32.totalorder %s23, 3
      %p205 = por %p203, %p204
      %p206 = scmp.ne.s32.totalorder %s197, %s198
      %p207 = scmp.eq.s32.totalorder %s23, 0
      %p208 = por %p206, %p207
      %p209 = scmp.ne.s32.totalorder %s197, %s198
      %p210 = scmp.eq.s32.totalorder %s24, 3
      %p211 = por %p209, %p210
      %p213 = scmp.ne.s32.totalorder %s198, %s212
      %p214 = scmp.eq.s32.totalorder %s24, 0
      %p215 = por %p213, %p214
      %s216 = ssub.s32 %s25, %s37
      %p217 = scmp.eq.s32.totalorder %s216, 0
      %s219 = sadd.s32 %s218, 1
      %s220 = scalar_select %p217, %s218, %s219
      %p223 = pneg %p217
      %p224 = scmp.eq.s32.totalorder %s18, 3
      %p225 = por %p223, %p224
      %p226 = scmp.ne.s32.totalorder %s218, %s221
      %p227 = scmp.eq.s32.totalorder %s18, 0
      %p228 = por %p226, %p227
      %p229 = scmp.ne.s32.totalorder %s218, %s221
      %p230 = scmp.eq.s32.totalorder %s23, 3
      %p231 = por %p229, %p230
      %p232 = scmp.ne.s32.totalorder %s221, %s222
      %p233 = scmp.eq.s32.totalorder %s23, 0
      %p234 = por %p232, %p233
      %p235 = scmp.ne.s32.totalorder %s221, %s222
      %p236 = scmp.eq.s32.totalorder %s24, 3
      %p237 = por %p235, %p236
      %p239 = scmp.ne.s32.totalorder %s222, %s238
      %p240 = scmp.eq.s32.totalorder %s24, 0
      %p241 = por %p239, %p240
      %p242 = scmp.le.s32.totalorder 1, %s18
      %p243 = scmp.lt.s32.totalorder %s18, 5
      %p244 = pnand %p242, %p243
      %p245 = pneg %p244
      // Predicated region
      $region9: #{googlenetv3_forward.1} parent=5 // pred_check
        _
      $region10: #{googlenetv3_forward.1} parent=5 // pred_check_branch
        %247 = sbr.rel (%p244) target = $region12
      $region11: #{googlenetv3_forward.1} parent=5 // pred_region
        %s248 = ssub.s32 %s18, 1
        // Predicated region
        $region13: #{googlenetv3_forward.1} parent=11 // pred_check
          %p249 = pneg %p103
        $region14: #{googlenetv3_forward.1} parent=11 // pred_check_branch
          %251 = sbr.rel (%p249) target = $region16
        $region15: #{googlenetv3_forward.1} parent=11 // pred_region
          _
        $region16: #{googlenetv3_forward.1} parent=11 // pred_fallthru
          _
        // Predicated region
        $region17: #{googlenetv3_forward.1} parent=11 // pred_check
          %p252 = pneg %p124
        $region18: #{googlenetv3_forward.1} parent=11 // pred_check_branch
          %254 = sbr.rel (%p252) target = $region20
        $region19: #{googlenetv3_forward.1} parent=11 // pred_region
          _
        $region20: #{googlenetv3_forward.1} parent=11 // pred_fallthru
          _
        // Predicated region
        $region21: #{googlenetv3_forward.1} parent=11 // pred_check
          %p255 = pneg %p145
        $region22: #{googlenetv3_forward.1} parent=11 // pred_check_branch
          %257 = sbr.rel (%p255) target = $region24
        $region23: #{googlenetv3_forward.1} parent=11 // pred_region
          _
        $region24: #{googlenetv3_forward.1} parent=11 // pred_fallthru
          _
        // Predicated region
        $region25: #{googlenetv3_forward.1} parent=11 // pred_check
          %p258 = pneg %p166
        $region26: #{googlenetv3_forward.1} parent=11 // pred_check_branch
          %260 = sbr.rel (%p258) target = $region28
        $region27: #{googlenetv3_forward.1} parent=11 // pred_region
          _
        $region28: #{googlenetv3_forward.1} parent=11 // pred_fallthru
          _
        // Predicated region
        $region29: #{googlenetv3_forward.1} parent=11 // pred_check
          %p261 = pneg %p187
        $region30: #{googlenetv3_forward.1} parent=11 // pred_check_branch
          %263 = sbr.rel (%p261) target = $region32
        $region31: #{googlenetv3_forward.1} parent=11 // pred_region
          %s265 = ssub.s32 8192, 8192
          %266 = vsyncadd [#allocation4], %s265
          %s267 = sshll.u32 [#allocation3], 4
          %s268 = int_to_ptr.vmem [resolvable:$true] %s267
          %273 = dma.hbm_to_vmem [thread:$0]  %s6, 8192, %s268, [#allocation4], 64, 64, 4
        $region32: #{googlenetv3_forward.1} parent=11 // pred_fallthru
          _
        // Predicated region
        $region33: #{googlenetv3_forward.1} parent=11 // pred_check
          %p274 = pneg %p208
        $region34: #{googlenetv3_forward.1} parent=11 // pred_check_branch
          %276 = sbr.rel (%p274) target = $region36
        $region35: #{googlenetv3_forward.1} parent=11 // pred_region
          _
        $region36: #{googlenetv3_forward.1} parent=11 // pred_fallthru
          _
      $region12: #{googlenetv3_forward.1} parent=5 // pred_fallthru
        _
      %p277 = scmp.lt.s32.totalorder %s18, 4
      // Predicated region
      $region37: #{googlenetv3_forward.1} parent=5 // pred_check
        %p278 = pneg %p277
      $region38: #{googlenetv3_forward.1} parent=5 // pred_check_branch
        %280 = sbr.rel (%p278) target = $region40
      $region39: #{googlenetv3_forward.1} parent=5 // pred_region
        // Predicated region
        $region41: #{googlenetv3_forward.1} parent=39 // pred_check
          %p281 = pneg %p50
        $region42: #{googlenetv3_forward.1} parent=39 // pred_check_branch
          %283 = sbr.rel (%p281) target = $region44
        $region43: #{googlenetv3_forward.1} parent=39 // pred_region
          %p284 = scmp.lt.s32.totalorder %s25, 1
          %s285 = scalar_select %p284, %s25, 1
          %s286 = smul.addr %s285, 38
          %s287 = smul.addr %s286, 4
          %s288 = scalar_lea.vmem %s0, %s287
        $region44: #{googlenetv3_forward.1} parent=39 // pred_fallthru
          _
        // Predicated region
        $region45: #{googlenetv3_forward.1} parent=39 // pred_check
          %p289 = pneg %p76
        $region46: #{googlenetv3_forward.1} parent=39 // pred_check_branch
          %291 = sbr.rel (%p289) target = $region48
        $region47: #{googlenetv3_forward.1} parent=39 // pred_region
          %p292 = scmp.lt.s32.totalorder %s26, 1
          %s293 = scalar_select %p292, %s26, 1
          %s294 = scalar_lea.vmem %s1, %s293
        $region48: #{googlenetv3_forward.1} parent=39 // pred_fallthru
          _
      $region40: #{googlenetv3_forward.1} parent=5 // pred_fallthru
        _
      %p295 = scmp.le.s32.totalorder 1, %s18
      %p296 = scmp.lt.s32.totalorder %s18, 5
      %p297 = pnand %p295, %p296
      %p298 = pneg %p297
      // Predicated region
      $region49: #{googlenetv3_forward.1} parent=5 // pred_check
        _
      $region50: #{googlenetv3_forward.1} parent=5 // pred_check_branch
        %300 = sbr.rel (%p297) target = $region52
      $region51: #{googlenetv3_forward.1} parent=5 // pred_region
        %s301 = ssub.s32 %s18, 1
        // Predicated region
        $region53: #{googlenetv3_forward.1} parent=51 // pred_check
          %p302 = pneg %p187
        $region54: #{googlenetv3_forward.1} parent=51 // pred_check_branch
          %304 = sbr.rel (%p302) target = $region56
        $region55: #{googlenetv3_forward.1} parent=51 // pred_region
          %305 = dma.done [#allocation4], 8192
        $region56: #{googlenetv3_forward.1} parent=51 // pred_fallthru
          _
        %p306 = scmp.lt.s32.totalorder %s27, 1
        %s307 = scalar_select %p306, %s27, 1
        %s308 = smul.addr %s307, 38
        %s309 = smul.addr %s308, 4
        %s310 = scalar_lea.vmem %s0, %s309
        %p311 = pneg %p56
        %p312 = pneg %p53
        %p313 = scmp.lt.s32.totalorder %s28, 1
        %s314 = scalar_select %p313, %s28, 1
        %s315 = scalar_lea.vmem %s1, %s314
        %p316 = pneg %p82
        %p317 = pneg %p79
        %p318 = pneg %p103
        %p319 = pneg %p100
        %p320 = pneg %p124
        %p321 = pneg %p121
        %p322 = pneg %p145
        %p323 = pneg %p142
        %p324 = pneg %p166
        %p325 = pneg %p163
        %p326 = pneg %p187
        %p327 = pneg %p184
        %p328 = pneg %p208
        %p329 = pneg %p205
        %p330 = pneg %p234
        %p331 = pneg %p231
        %s332 = sand.u32 %s221, 1
        %s333 = scalar_lea.sflag [#allocation5], %s332
        %s334 = sand.u32 %s221, 1
        %s335 = scalar_lea.vmem [#allocation6], %s334
        %p336 = scmp.lt.s32.totalorder %s27, 1
        %s337 = scalar_select %p336, %s27, 1
        %s338 = smul.addr %s337, 38
        %s339 = smul.addr %s338, 4
        %s340 = scalar_lea.vmem %s0, %s339
        %p341 = scmp.lt.s32.totalorder %s28, 1
        %s342 = scalar_select %p341, %s28, 1
        %s343 = scalar_lea.vmem %s1, %s342
        %p345 = scmp.eq.s32.totalorder %s28, 0
        // Predicated region
        $region57: #{googlenetv3_forward.1} parent=51 // pred_check
          %p346 = pneg %p345
        $region58: #{googlenetv3_forward.1} parent=51 // pred_check_branch
          %348 = sbr.rel (%p346) target = $region60
        $region59: #{googlenetv3_forward.1} parent=51 // pred_region
          %349 = vst [vmem:[#allocation2] sm:$0x1] 0.0
        $region60: #{googlenetv3_forward.1} parent=51 // pred_fallthru
          _
        %s350 = smul.u32 %s28, 128
        %s351 = sshra.s32 %s350, 3
        %s352 = sand.u32 %s350, 7
        %s353 = smul.addr %s351, 4
        %s354 = scalar_lea.vmem %s340, %s353
        %v355 = vld [vmem:[%s354] sm:$0xf]
        %v356 = vld [vmem:[%s354 + $0x4] sm:$0xf]
        %v357 = vld [vmem:[%s354 + $0x8] sm:$0xf]
        %v358 = vld [vmem:[%s354 + $0xc] sm:$0xf]
        %v359 = vld [vmem:[%s354 + $0x10] sm:$0xf]
        %v360 = vld [vmem:[%s354 + $0x14] sm:$0xf]
        %v361 = vld [vmem:[%s354 + $0x18] sm:$0xf]
        %v362 = vld [vmem:[%s354 + $0x1c] sm:$0xf]
        %v363 = vld [vmem:[%s354 + $0x20] sm:$0xf]
        %v364 = vld [vmem:[%s354 + $0x24] sm:$0xf]
        %v365 = vld [vmem:[%s354 + $0x28] sm:$0xf]
        %v366 = vld [vmem:[%s354 + $0x2c] sm:$0xf]
        %v367 = vld [vmem:[%s354 + $0x30] sm:$0xf]
        %v368 = vld [vmem:[%s354 + $0x34] sm:$0xf]
        %v369 = vld [vmem:[%s354 + $0x38] sm:$0xf]
        %v370 = vld [vmem:[%s354 + $0x3c] sm:$0xf]
        %v371 = vld [vmem:[%s2] sm:$0xf]
        %v372 = vld [vmem:[%s2 + $0x4] sm:$0x3]
        %s373 = sadd.s32 %s350, 16
        %s374 = sshra.s32 %s373, 3
        %s375 = sand.u32 %s373, 7
        %s376 = smul.addr %s374, 4
        %s377 = scalar_lea.vmem %s340, %s376
        %v378 = vld [vmem:[%s377] sm:$0xf]
        %v379 = vld [vmem:[%s377 + $0x4] sm:$0xf]
        %v380 = vld [vmem:[%s377 + $0x8] sm:$0xf]
        %v381 = vld [vmem:[%s377 + $0xc] sm:$0xf]
        %v382 = vld [vmem:[%s377 + $0x10] sm:$0xf]
        %v383 = vld [vmem:[%s377 + $0x14] sm:$0xf]
        %v384 = vld [vmem:[%s377 + $0x18] sm:$0xf]
        %v385 = vld [vmem:[%s377 + $0x1c] sm:$0xf]
        %v386 = vld [vmem:[%s377 + $0x20] sm:$0xf]
        %v387 = vld [vmem:[%s377 + $0x24] sm:$0xf]
        %v388 = vld [vmem:[%s377 + $0x28] sm:$0xf]
        %v389 = vld [vmem:[%s377 + $0x2c] sm:$0xf]
        %v390 = vld [vmem:[%s377 + $0x30] sm:$0xf]
        %v391 = vld [vmem:[%s377 + $0x34] sm:$0xf]
        %v392 = vld [vmem:[%s377 + $0x38] sm:$0xf]
        %v393 = vld [vmem:[%s377 + $0x3c] sm:$0xf]
        %s394 = scalar_lea.vmem %s2, 8
        %v395 = vld [vmem:[%s394] sm:$0xf]
        %v396 = vld [vmem:[%s394 + $0x4] sm:$0x3]
        %v413 = vunpack.c.l.b16 %v378
        %v414 = vunpack.c.l.b16 %v379
        %v415 = vunpack.c.l.b16 %v380
        %v416 = vunpack.c.l.b16 %v381
        %v417 = vunpack.c.l.b16 %v382
        %v418 = vunpack.c.l.b16 %v383
        %v419 = vunpack.c.l.b16 %v384
        %v420 = vunpack.c.l.b16 %v385
        %v421 = vunpack.c.l.b16 %v386
        %v422 = vunpack.c.l.b16 %v387
        %v423 = vunpack.c.l.b16 %v388
        %v424 = vunpack.c.l.b16 %v389
        %v425 = vunpack.c.l.b16 %v390
        %v426 = vunpack.c.l.b16 %v391
        %v427 = vunpack.c.l.b16 %v392
        %v428 = vunpack.c.l.b16 %v393
        %v429 = vpack.c.b16 %v414, %v413
        %v430 = vpack.c.b16 %v416, %v415
        %v431 = vpack.c.b16 %v418, %v417
        %v432 = vpack.c.b16 %v420, %v419
        %v433 = vpack.c.b16 %v422, %v421
        %v434 = vpack.c.b16 %v424, %v423
        %v435 = vpack.c.b16 %v426, %v425
        %v436 = vpack.c.b16 %v428, %v427
        %v439 = vunpack.c.l.b16 %v395
        %v440 = vunpack.c.l.b16 %v396
        %v441 = vpack.c.b16 %v440, %v439
        %vm442 = vcmask 97280
        %v444 = vsel %vm442, %v429, 0
        %v447 = vsel %vm442, %v430, 0
        %v450 = vsel %vm442, %v431, 0
        %v453 = vsel %vm442, %v432, 0
        %v456 = vsel %vm442, %v433, 0
        %v459 = vsel %vm442, %v434, 0
        %v462 = vsel %vm442, %v435, 0
        %v465 = vsel %vm442, %v436, 0
        %vm467 = vcmask 1045504
        %v469 = vsel %vm467, %v441, 0
        %471 = vmatprep.subr.bf16.mxu0 0
        %472 = vmatpush1.bf16.msra.mxu0 0
        %473 = vmatprep.subr.bf16.mxu0 0
        %474 = vmatpush1.bf16.msra.mxu0 0
        %475 = vmatprep.subr.bf16.mxu0 0
        %476 = vmatpush1.bf16.msra.mxu0 0
        %477 = vmatprep.subr.bf16.mxu0 0
        %478 = vmatpush1.bf16.msra.mxu0 0
        %479 = vmatprep.subr.bf16.mxu0 0
        %480 = vmatpush1.bf16.msra.mxu0 0
        %481 = vmatprep.subr.bf16.mxu0 0
        %482 = vmatpush1.bf16.msra.mxu0 0
        %483 = vmatprep.subr.bf16.mxu0 0
        %484 = vmatpush1.bf16.msra.mxu0 0
        %485 = vmatprep.subr.bf16.mxu0 0
        %486 = vmatpush1.bf16.msra.mxu0 %v469
        %487 = vmatprep.subr.bf16.mxu0 0
        %488 = vmatpush2.bf16.msra.mxu0 0
        %489 = vmatprep.subr.bf16.mxu0 0
        %490 = vmatpush2.bf16.msra.mxu0 0
        %491 = vmatprep.subr.bf16.mxu0 0
        %492 = vmatpush2.bf16.msra.mxu0 0
        %493 = vmatprep.subr.bf16.mxu0 0
        %494 = vmatpush2.bf16.msra.mxu0 0
        %495 = vmatprep.subr.bf16.mxu0 0
        %496 = vmatpush2.bf16.msra.mxu0 0
        %497 = vmatprep.subr.bf16.mxu0 0
        %498 = vmatpush2.bf16.msra.mxu0 0
        %499 = vmatprep.subr.bf16.mxu0 0
        %500 = vmatpush2.bf16.msra.mxu0 0
        %501 = vmatprep.subr.bf16.mxu0 0
        %502 = vmatpush2.bf16.msra.mxu0 0
        %503 = vmatprep.mubr.bf16.mxu0 0
        %504 = vmatmul.mubr.bf16.gmra.mxu0 %v444
        %v505 = vpop.f32.mrf.mxu0
        %v506 = vadd.f32 0.0, %v505
        %v507 = vpop.f32.mrf.mxu0
        %v508 = vpop.f32.mrf.mxu0
        %v509 = vadd.f32 0.0, %v508
        %v510 = vpop.f32.mrf.mxu0
        %511 = vmatprep.mubr.bf16.mxu0 0
        %512 = vmatmul.mubr.bf16.gmra.mxu0 %v447
        %v513 = vpop.f32.mrf.mxu0
        %v514 = vadd.f32 0.0, %v513
        %v515 = vpop.f32.mrf.mxu0
        %v516 = vpop.f32.mrf.mxu0
        %v517 = vadd.f32 0.0, %v516
        %v518 = vpop.f32.mrf.mxu0
        %519 = vmatprep.mubr.bf16.mxu0 0
        %520 = vmatmul.mubr.bf16.gmra.mxu0 %v450
        %v521 = vpop.f32.mrf.mxu0
        %v522 = vadd.f32 0.0, %v521
        %v523 = vpop.f32.mrf.mxu0
        %v524 = vpop.f32.mrf.mxu0
        %v525 = vadd.f32 0.0, %v524
        %v526 = vpop.f32.mrf.mxu0
        %527 = vmatprep.mubr.bf16.mxu0 0
        %528 = vmatmul.mubr.bf16.gmra.mxu0 %v453
        %v529 = vpop.f32.mrf.mxu0
        %v530 = vadd.f32 0.0, %v529
        %v531 = vpop.f32.mrf.mxu0
        %v532 = vpop.f32.mrf.mxu0
        %v533 = vadd.f32 0.0, %v532
        %v534 = vpop.f32.mrf.mxu0
        %535 = vmatprep.mubr.bf16.mxu0 0
        %536 = vmatmul.mubr.bf16.gmra.mxu0 %v456
        %v537 = vpop.f32.mrf.mxu0
        %v538 = vadd.f32 0.0, %v537
        %v539 = vpop.f32.mrf.mxu0
        %v540 = vpop.f32.mrf.mxu0
        %v541 = vadd.f32 0.0, %v540
        %v542 = vpop.f32.mrf.mxu0
        %543 = vmatprep.mubr.bf16.mxu0 0
        %544 = vmatmul.mubr.bf16.gmra.mxu0 %v459
        %v545 = vpop.f32.mrf.mxu0
        %v546 = vadd.f32 0.0, %v545
        %v547 = vpop.f32.mrf.mxu0
        %v548 = vpop.f32.mrf.mxu0
        %v549 = vadd.f32 0.0, %v548
        %v550 = vpop.f32.mrf.mxu0
        %551 = vmatprep.mubr.bf16.mxu0 0
        %552 = vmatmul.mubr.bf16.gmra.mxu0 %v462
        %v553 = vpop.f32.mrf.mxu0
        %v554 = vadd.f32 0.0, %v553
        %v555 = vpop.f32.mrf.mxu0
        %v556 = vpop.f32.mrf.mxu0
        %v557 = vadd.f32 0.0, %v556
        %v558 = vpop.f32.mrf.mxu0
        %559 = vmatprep.mubr.bf16.mxu0 0
        %560 = vmatmul.mubr.bf16.gmra.mxu0 %v465
        %v561 = vpop.f32.mrf.mxu0
        %v562 = vadd.f32 0.0, %v561
        %v563 = vpop.f32.mrf.mxu0
        %v564 = vpop.f32.mrf.mxu0
        %v565 = vadd.f32 0.0, %v564
        %v566 = vpop.f32.mrf.mxu0
        %567 = vdwg.mxu0
        %v584 = vunpack.c.l.b16 %v355
        %v585 = vunpack.c.l.b16 %v356
        %v586 = vunpack.c.l.b16 %v357
        %v587 = vunpack.c.l.b16 %v358
        %v588 = vunpack.c.l.b16 %v359
        %v589 = vunpack.c.l.b16 %v360
        %v590 = vunpack.c.l.b16 %v361
        %v591 = vunpack.c.l.b16 %v362
        %v592 = vunpack.c.l.b16 %v363
        %v593 = vunpack.c.l.b16 %v364
        %v594 = vunpack.c.l.b16 %v365
        %v595 = vunpack.c.l.b16 %v366
        %v596 = vunpack.c.l.b16 %v367
        %v597 = vunpack.c.l.b16 %v368
        %v598 = vunpack.c.l.b16 %v369
        %v599 = vunpack.c.l.b16 %v370
        %v600 = vpack.c.b16 %v585, %v584
        %v601 = vpack.c.b16 %v587, %v586
        %v602 = vpack.c.b16 %v589, %v588
        %v603 = vpack.c.b16 %v591, %v590
        %v604 = vpack.c.b16 %v593, %v592
        %v605 = vpack.c.b16 %v595, %v594
        %v606 = vpack.c.b16 %v597, %v596
        %v607 = vpack.c.b16 %v599, %v598
        %v610 = vunpack.c.l.b16 %v371
        %v611 = vunpack.c.l.b16 %v372
        %v612 = vpack.c.b16 %v611, %v610
        %v614 = vsel %vm442, %v600, 0
        %v617 = vsel %vm442, %v601, 0
        %v620 = vsel %vm442, %v602, 0
        %v623 = vsel %vm442, %v603, 0
        %v626 = vsel %vm442, %v604, 0
        %v629 = vsel %vm442, %v605, 0
        %v632 = vsel %vm442, %v606, 0
        %v635 = vsel %vm442, %v607, 0
        %v638 = vsel %vm467, %v612, 0
        %640 = vmatprep.subr.bf16.mxu0 0
        %641 = vmatpush1.bf16.msra.mxu0 0
        %642 = vmatprep.subr.bf16.mxu0 0
        %643 = vmatpush1.bf16.msra.mxu0 0
        %644 = vmatprep.subr.bf16.mxu0 0
        %645 = vmatpush1.bf16.msra.mxu0 0
        %646 = vmatprep.subr.bf16.mxu0 0
        %647 = vmatpush1.bf16.msra.mxu0 0
        %648 = vmatprep.subr.bf16.mxu0 0
        %649 = vmatpush1.bf16.msra.mxu0 0
        %650 = vmatprep.subr.bf16.mxu0 0
        %651 = vmatpush1.bf16.msra.mxu0 0
        %652 = vmatprep.subr.bf16.mxu0 0
        %653 = vmatpush1.bf16.msra.mxu0 0
        %654 = vmatprep.subr.bf16.mxu0 0
        %655 = vmatpush1.bf16.msra.mxu0 %v638
        %656 = vmatprep.subr.bf16.mxu0 0
        %657 = vmatpush2.bf16.msra.mxu0 0
        %658 = vmatprep.subr.bf16.mxu0 0
        %659 = vmatpush2.bf16.msra.mxu0 0
        %660 = vmatprep.subr.bf16.mxu0 0
        %661 = vmatpush2.bf16.msra.mxu0 0
        %662 = vmatprep.subr.bf16.mxu0 0
        %663 = vmatpush2.bf16.msra.mxu0 0
        %664 = vmatprep.subr.bf16.mxu0 0
        %665 = vmatpush2.bf16.msra.mxu0 0
        %666 = vmatprep.subr.bf16.mxu0 0
        %667 = vmatpush2.bf16.msra.mxu0 0
        %668 = vmatprep.subr.bf16.mxu0 0
        %669 = vmatpush2.bf16.msra.mxu0 0
        %670 = vmatprep.subr.bf16.mxu0 0
        %671 = vmatpush2.bf16.msra.mxu0 0
        %672 = vmatprep.mubr.bf16.mxu0 0
        %673 = vmatmul.mubr.bf16.gmra.mxu0 %v614
        %v674 = vpop.f32.mrf.mxu0
        %v675 = vadd.f32 %v506, %v674
        %v676 = vpop.f32.mrf.mxu0
        %v677 = vpop.f32.mrf.mxu0
        %v678 = vadd.f32 %v509, %v677
        %v679 = vpop.f32.mrf.mxu0
        %680 = vmatprep.mubr.bf16.mxu0 0
        %681 = vmatmul.mubr.bf16.gmra.mxu0 %v617
        %v682 = vpop.f32.mrf.mxu0
        %v683 = vadd.f32 %v514, %v682
        %v684 = vpop.f32.mrf.mxu0
        %v685 = vpop.f32.mrf.mxu0
        %v686 = vadd.f32 %v517, %v685
        %v687 = vpop.f32.mrf.mxu0
        %688 = vmatprep.mubr.bf16.mxu0 0
        %689 = vmatmul.mubr.bf16.gmra.mxu0 %v620
        %v690 = vpop.f32.mrf.mxu0
        %v691 = vadd.f32 %v522, %v690
        %v692 = vpop.f32.mrf.mxu0
        %v693 = vpop.f32.mrf.mxu0
        %v694 = vadd.f32 %v525, %v693
        %v695 = vpop.f32.mrf.mxu0
        %696 = vmatprep.mubr.bf16.mxu0 0
        %697 = vmatmul.mubr.bf16.gmra.mxu0 %v623
        %v698 = vpop.f32.mrf.mxu0
        %v699 = vadd.f32 %v530, %v698
        %v700 = vpop.f32.mrf.mxu0
        %v701 = vpop.f32.mrf.mxu0
        %v702 = vadd.f32 %v533, %v701
        %v703 = vpop.f32.mrf.mxu0
        %704 = vmatprep.mubr.bf16.mxu0 0
        %705 = vmatmul.mubr.bf16.gmra.mxu0 %v626
        %v706 = vpop.f32.mrf.mxu0
        %v707 = vadd.f32 %v538, %v706
        %v708 = vpop.f32.mrf.mxu0
        %v709 = vpop.f32.mrf.mxu0
        %v710 = vadd.f32 %v541, %v709
        %v711 = vpop.f32.mrf.mxu0
        %712 = vmatprep.mubr.bf16.mxu0 0
        %713 = vmatmul.mubr.bf16.gmra.mxu0 %v629
        %v714 = vpop.f32.mrf.mxu0
        %v715 = vadd.f32 %v546, %v714
        %v716 = vpop.f32.mrf.mxu0
        %v717 = vpop.f32.mrf.mxu0
        %v718 = vadd.f32 %v549, %v717
        %v719 = vpop.f32.mrf.mxu0
        %720 = vmatprep.mubr.bf16.mxu0 0
        %721 = vmatmul.mubr.bf16.gmra.mxu0 %v632
        %v722 = vpop.f32.mrf.mxu0
        %v723 = vadd.f32 %v554, %v722
        %v724 = vpop.f32.mrf.mxu0
        %v725 = vpop.f32.mrf.mxu0
        %v726 = vadd.f32 %v557, %v725
        %v727 = vpop.f32.mrf.mxu0
        %728 = vmatprep.mubr.bf16.mxu0 0
        %729 = vmatmul.mubr.bf16.gmra.mxu0 %v635
        %v730 = vpop.f32.mrf.mxu0
        %v731 = vadd.f32 %v562, %v730
        %v732 = vpop.f32.mrf.mxu0
        %v733 = vpop.f32.mrf.mxu0
        %v734 = vadd.f32 %v565, %v733
        %v735 = vpop.f32.mrf.mxu0
        %736 = vdwg.mxu0
        %s737 = sadd.s32 %s350, 32
        %s738 = sshra.s32 %s737, 3
        %s739 = sand.u32 %s737, 7
        %s740 = smul.addr %s738, 4
        %s741 = scalar_lea.vmem %s340, %s740
        %v742 = vld [vmem:[%s741] sm:$0xf]
        %v743 = vld [vmem:[%s741 + $0x4] sm:$0xf]
        %v744 = vld [vmem:[%s741 + $0x8] sm:$0xf]
        %v745 = vld [vmem:[%s741 + $0xc] sm:$0xf]
        %v746 = vld [vmem:[%s741 + $0x10] sm:$0xf]
        %v747 = vld [vmem:[%s741 + $0x14] sm:$0xf]
        %v748 = vld [vmem:[%s741 + $0x18] sm:$0xf]
        %v749 = vld [vmem:[%s741 + $0x1c] sm:$0xf]
        %v750 = vld [vmem:[%s741 + $0x20] sm:$0xf]
        %v751 = vld [vmem:[%s741 + $0x24] sm:$0xf]
        %v752 = vld [vmem:[%s741 + $0x28] sm:$0xf]
        %v753 = vld [vmem:[%s741 + $0x2c] sm:$0xf]
        %v754 = vld [vmem:[%s741 + $0x30] sm:$0xf]
        %v755 = vld [vmem:[%s741 + $0x34] sm:$0xf]
        %v756 = vld [vmem:[%s741 + $0x38] sm:$0xf]
        %v757 = vld [vmem:[%s741 + $0x3c] sm:$0xf]
        %s758 = scalar_lea.vmem %s2, 16
        %v759 = vld [vmem:[%s758] sm:$0xf]
        %v760 = vld [vmem:[%s758 + $0x4] sm:$0x3]
        %v777 = vunpack.c.l.b16 %v742
        %v778 = vunpack.c.l.b16 %v743
        %v779 = vunpack.c.l.b16 %v744
        %v780 = vunpack.c.l.b16 %v745
        %v781 = vunpack.c.l.b16 %v746
        %v782 = vunpack.c.l.b16 %v747
        %v783 = vunpack.c.l.b16 %v748
        %v784 = vunpack.c.l.b16 %v749
        %v785 = vunpack.c.l.b16 %v750
        %v786 = vunpack.c.l.b16 %v751
        %v787 = vunpack.c.l.b16 %v752
        %v788 = vunpack.c.l.b16 %v753
        %v789 = vunpack.c.l.b16 %v754
        %v790 = vunpack.c.l.b16 %v755
        %v791 = vunpack.c.l.b16 %v756
        %v792 = vunpack.c.l.b16 %v757
        %v793 = vpack.c.b16 %v778, %v777
        %v794 = vpack.c.b16 %v780, %v779
        %v795 = vpack.c.b16 %v782, %v781
        %v796 = vpack.c.b16 %v784, %v783
        %v797 = vpack.c.b16 %v786, %v785
        %v798 = vpack.c.b16 %v788, %v787
        %v799 = vpack.c.b16 %v790, %v789
        %v800 = vpack.c.b16 %v792, %v791
        %v803 = vunpack.c.l.b16 %v759
        %v804 = vunpack.c.l.b16 %v760
        %v805 = vpack.c.b16 %v804, %v803
        %v807 = vsel %vm442, %v793, 0
        %v810 = vsel %vm442, %v794, 0
        %v813 = vsel %vm442, %v795, 0
        %v816 = vsel %vm442, %v796, 0
        %v819 = vsel %vm442, %v797, 0
        %v822 = vsel %vm442, %v798, 0
        %v825 = vsel %vm442, %v799, 0
        %v828 = vsel %vm442, %v800, 0
        %v831 = vsel %vm467, %v805, 0
        %833 = vmatprep.subr.bf16.mxu0 0
        %834 = vmatpush1.bf16.msra.mxu0 0
        %835 = vmatprep.subr.bf16.mxu0 0
        %836 = vmatpush1.bf16.msra.mxu0 0
        %837 = vmatprep.subr.bf16.mxu0 0
        %838 = vmatpush1.bf16.msra.mxu0 0
        %839 = vmatprep.subr.bf16.mxu0 0
        %840 = vmatpush1.bf16.msra.mxu0 0
        %841 = vmatprep.subr.bf16.mxu0 0
        %842 = vmatpush1.bf16.msra.mxu0 0
        %843 = vmatprep.subr.bf16.mxu0 0
        %844 = vmatpush1.bf16.msra.mxu0 0
        %845 = vmatprep.subr.bf16.mxu0 0
        %846 = vmatpush1.bf16.msra.mxu0 0
        %847 = vmatprep.subr.bf16.mxu0 0
        %848 = vmatpush1.bf16.msra.mxu0 %v831
        %849 = vmatprep.subr.bf16.mxu0 0
        %850 = vmatpush2.bf16.msra.mxu0 0
        %851 = vmatprep.subr.bf16.mxu0 0
        %852 = vmatpush2.bf16.msra.mxu0 0
        %853 = vmatprep.subr.bf16.mxu0 0
        %854 = vmatpush2.bf16.msra.mxu0 0
        %855 = vmatprep.subr.bf16.mxu0 0
        %856 = vmatpush2.bf16.msra.mxu0 0
        %857 = vmatprep.subr.bf16.mxu0 0
        %858 = vmatpush2.bf16.msra.mxu0 0
        %859 = vmatprep.subr.bf16.mxu0 0
        %860 = vmatpush2.bf16.msra.mxu0 0
        %861 = vmatprep.subr.bf16.mxu0 0
        %862 = vmatpush2.bf16.msra.mxu0 0
        %863 = vmatprep.subr.bf16.mxu0 0
        %864 = vmatpush2.bf16.msra.mxu0 0
        %865 = vmatprep.mubr.bf16.mxu0 0
        %866 = vmatmul.mubr.bf16.gmra.mxu0 %v807
        %v867 = vpop.f32.mrf.mxu0
        %v868 = vadd.f32 0.0, %v867
        %v869 = vpop.f32.mrf.mxu0
        %v870 = vpop.f32.mrf.mxu0
        %v871 = vadd.f32 0.0, %v870
        %v872 = vpop.f32.mrf.mxu0
        %873 = vmatprep.mubr.bf16.mxu0 0
        %874 = vmatmul.mubr.bf16.gmra.mxu0 %v810
        %v875 = vpop.f32.mrf.mxu0
        %v876 = vadd.f32 0.0, %v875
        %v877 = vpop.f32.mrf.mxu0
        %v878 = vpop.f32.mrf.mxu0
        %v879 = vadd.f32 0.0, %v878
        %v880 = vpop.f32.mrf.mxu0
        %881 = vmatprep.mubr.bf16.mxu0 0
        %882 = vmatmul.mubr.bf16.gmra.mxu0 %v813
        %v883 = vpop.f32.mrf.mxu0
        %v884 = vadd.f32 0.0, %v883
        %v885 = vpop.f32.mrf.mxu0
        %v886 = vpop.f32.mrf.mxu0
        %v887 = vadd.f32 0.0, %v886
        %v888 = vpop.f32.mrf.mxu0
        %889 = vmatprep.mubr.bf16.mxu0 0
        %890 = vmatmul.mubr.bf16.gmra.mxu0 %v816
        %v891 = vpop.f32.mrf.mxu0
        %v892 = vadd.f32 0.0, %v891
        %v893 = vpop.f32.mrf.mxu0
        %v894 = vpop.f32.mrf.mxu0
        %v895 = vadd.f32 0.0, %v894
        %v896 = vpop.f32.mrf.mxu0
        %897 = vmatprep.mubr.bf16.mxu0 0
        %898 = vmatmul.mubr.bf16.gmra.mxu0 %v819
        %v899 = vpop.f32.mrf.mxu0
        %v900 = vadd.f32 0.0, %v899
        %v901 = vpop.f32.mrf.mxu0
        %v902 = vpop.f32.mrf.mxu0
        %v903 = vadd.f32 0.0, %v902
        %v904 = vpop.f32.mrf.mxu0
        %905 = vmatprep.mubr.bf16.mxu0 0
        %906 = vmatmul.mubr.bf16.gmra.mxu0 %v822
        %v907 = vpop.f32.mrf.mxu0
        %v908 = vadd.f32 0.0, %v907
        %v909 = vpop.f32.mrf.mxu0
        %v910 = vpop.f32.mrf.mxu0
        %v911 = vadd.f32 0.0, %v910
        %v912 = vpop.f32.mrf.mxu0
        %913 = vmatprep.mubr.bf16.mxu0 0
        %914 = vmatmul.mubr.bf16.gmra.mxu0 %v825
        %v915 = vpop.f32.mrf.mxu0
        %v916 = vadd.f32 0.0, %v915
        %v917 = vpop.f32.mrf.mxu0
        %v918 = vpop.f32.mrf.mxu0
        %v919 = vadd.f32 0.0, %v918
        %v920 = vpop.f32.mrf.mxu0
        %921 = vmatprep.mubr.bf16.mxu0 0
        %922 = vmatmul.mubr.bf16.gmra.mxu0 %v828
        %v923 = vpop.f32.mrf.mxu0
        %v924 = vadd.f32 0.0, %v923
        %v925 = vpop.f32.mrf.mxu0
        %v926 = vpop.f32.mrf.mxu0
        %v927 = vadd.f32 0.0, %v926
        %v928 = vpop.f32.mrf.mxu0
        %929 = vdwg.mxu0
        %v930 = vadd.f32 %v675, %v868
        %v931 = vadd.f32 %v678, %v871
        %v932 = vadd.f32 %v683, %v876
        %v933 = vadd.f32 %v686, %v879
        %v934 = vadd.f32 %v691, %v884
        %v935 = vadd.f32 %v694, %v887
        %v936 = vadd.f32 %v699, %v892
        %v937 = vadd.f32 %v702, %v895
        %v938 = vadd.f32 %v707, %v900
        %v939 = vadd.f32 %v710, %v903
        %v940 = vadd.f32 %v715, %v908
        %v941 = vadd.f32 %v718, %v911
        %v942 = vadd.f32 %v723, %v916
        %v943 = vadd.f32 %v726, %v919
        %v944 = vadd.f32 %v731, %v924
        %v945 = vadd.f32 %v734, %v927
        %v946 = vld [vmem:[%s3] sm:$0x1]
        %v948 = vlaneseq
        %v949 = vshrl.u32 %v948, 7
        %v950 = vsub.s32 0, %v949
        %v951 = vrot.slane %v946, %v950
        %v953 = vadd.f32 %v930, %v951
        %v954 = vadd.f32 %v931, %v951
        %v955 = vadd.f32 %v932, %v951
        %v956 = vadd.f32 %v933, %v951
        %v957 = vadd.f32 %v934, %v951
        %v958 = vadd.f32 %v935, %v951
        %v959 = vadd.f32 %v936, %v951
        %v960 = vadd.f32 %v937, %v951
        %v961 = vadd.f32 %v938, %v951
        %v962 = vadd.f32 %v939, %v951
        %v963 = vadd.f32 %v940, %v951
        %v964 = vadd.f32 %v941, %v951
        %v965 = vadd.f32 %v942, %v951
        %v966 = vadd.f32 %v943, %v951
        %v967 = vadd.f32 %v944, %v951
        %v968 = vadd.f32 %v945, %v951
        %v969 = vmax.f32 %v953, 0.0
        %v970 = vmax.f32 %v954, 0.0
        %v971 = vmax.f32 %v955, 0.0
        %v972 = vmax.f32 %v956, 0.0
        %v973 = vmax.f32 %v957, 0.0
        %v974 = vmax.f32 %v958, 0.0
        %v975 = vmax.f32 %v959, 0.0
        %v976 = vmax.f32 %v960, 0.0
        %v977 = vmax.f32 %v961, 0.0
        %v978 = vmax.f32 %v962, 0.0
        %v979 = vmax.f32 %v963, 0.0
        %v980 = vmax.f32 %v964, 0.0
        %v981 = vmax.f32 %v965, 0.0
        %v982 = vmax.f32 %v966, 0.0
        %v983 = vmax.f32 %v967, 0.0
        %v984 = vmax.f32 %v968, 0.0
        %v985 = vld [vmem:[#allocation2] sm:$0x1]
        %v986 = vld [vmem:[%s343] sm:$0x1]
        %987 = vmatprep.subr.mxu0 0.0
        %988 = vmatpush1.msra.mxu0 %v984
        %989 = vmatprep.subr.mxu0 0.0
        %990 = vmatpush1.msra.mxu0 %v983
        %991 = vmatprep.subr.mxu0 0.0
        %992 = vmatpush1.msra.mxu0 %v982
        %993 = vmatprep.subr.mxu0 0.0
        %994 = vmatpush1.msra.mxu0 %v981
        %995 = vmatprep.subr.mxu0 0.0
        %996 = vmatpush1.msra.mxu0 %v980
        %997 = vmatprep.subr.mxu0 0.0
        %998 = vmatpush1.msra.mxu0 %v979
        %999 = vmatprep.subr.mxu0 0.0
        %1000 = vmatpush1.msra.mxu0 %v978
        %1001 = vmatprep.subr.mxu0 0.0
        %1002 = vmatpush1.msra.mxu0 %v977
        %1003 = vmatprep.subr.mxu0 0.0
        %1004 = vmatpush1.msra.mxu0 %v976
        %1005 = vmatprep.subr.mxu0 0.0
        %1006 = vmatpush1.msra.mxu0 %v975
        %1007 = vmatprep.subr.mxu0 0.0
        %1008 = vmatpush1.msra.mxu0 %v974
        %1009 = vmatprep.subr.mxu0 0.0
        %1010 = vmatpush1.msra.mxu0 %v973
        %1011 = vmatprep.subr.mxu0 0.0
        %1012 = vmatpush1.msra.mxu0 %v972
        %1013 = vmatprep.subr.mxu0 0.0
        %1014 = vmatpush1.msra.mxu0 %v971
        %1015 = vmatprep.subr.mxu0 0.0
        %1016 = vmatpush1.msra.mxu0 %v970
        %1017 = vmatprep.subr.mxu0 0.0
        %1018 = vmatpush1.msra.mxu0 %v969
        %1019 = vmatprep.subr.mxu0 0.0
        %1020 = vmatpush2.msra.mxu0 0.0
        %1021 = vmatprep.subr.mxu0 0.0
        %1022 = vmatpush2.msra.mxu0 0.0
        %1023 = vmatprep.subr.mxu0 0.0
        %1024 = vmatpush2.msra.mxu0 0.0
        %1025 = vmatprep.subr.mxu0 0.0
        %1026 = vmatpush2.msra.mxu0 0.0
        %1027 = vmatprep.subr.mxu0 0.0
        %1028 = vmatpush2.msra.mxu0 0.0
        %1029 = vmatprep.subr.mxu0 0.0
        %1030 = vmatpush2.msra.mxu0 0.0
        %1031 = vmatprep.subr.mxu0 0.0
        %1032 = vmatpush2.msra.mxu0 0.0
        %1033 = vmatprep.subr.mxu0 0.0
        %1034 = vmatpush2.msra.mxu0 0.0
        %1035 = vmatprep.subr.mxu0 0.0
        %1036 = vmatpush2.msra.mxu0 0.0
        %1037 = vmatprep.subr.mxu0 0.0
        %1038 = vmatpush2.msra.mxu0 0.0
        %1039 = vmatprep.subr.mxu0 0.0
        %1040 = vmatpush2.msra.mxu0 0.0
        %1041 = vmatprep.subr.mxu0 0.0
        %1042 = vmatpush2.msra.mxu0 0.0
        %1043 = vmatprep.subr.mxu0 0.0
        %1044 = vmatpush2.msra.mxu0 0.0
        %1045 = vmatprep.subr.mxu0 0.0
        %1046 = vmatpush2.msra.mxu0 0.0
        %1047 = vmatprep.subr.mxu0 0.0
        %1048 = vmatpush2.msra.mxu0 0.0
        %1049 = vmatprep.subr.mxu0 0.0
        %1050 = vmatpush2.msra.mxu0 0.0
        %1051 = vmatprep.mubr.f32.mxu0 0.0
        %1052 = vmatmul.mubr.f32.gmra.mxu0 %v986
        %v1053 = vpop.f32.mrf.mxu0
        %v1054 = vadd.f32 0.0, %v1053
        %v1055 = vpop.f32.mrf.mxu0
        %1056 = vdwg.mxu0
        %v1057 = vadd.f32 %v985, %v1054
        %1058 = vst [vmem:[#allocation2] sm:$0x1] %v1057
        %p1059 = scmp.eq.s32.totalorder %s28, 1
        // Predicated region
        $region61: #{googlenetv3_forward.1} parent=51 // pred_check
          %p1060 = pneg %p1059
        $region62: #{googlenetv3_forward.1} parent=51 // pred_check_branch
          %1062 = sbr.rel (%p1060) target = $region64
        $region63: #{googlenetv3_forward.1} parent=51 // pred_region
          %v1063 = vld [vmem:[#allocation2] sm:$0x1]
          %v1064 = vpack.c.bf16 %v1063, %v1063
          %v1065 = vld [vmem:[%s4] sm:$0xff]
          %v1066 = vld [vmem:[%s4 + $0x8] sm:$0xff]
          %v1067 = vld [vmem:[%s4 + $0x10] sm:$0xff]
          %v1068 = vld [vmem:[%s4 + $0x18] sm:$0xff]
          %v1069 = vld [vmem:[%s4 + $0x20] sm:$0xff]
          %v1070 = vld [vmem:[%s4 + $0x28] sm:$0xff]
          %v1071 = vld [vmem:[%s4 + $0x30] sm:$0xff]
          %v1072 = vld [vmem:[%s4 + $0x38] sm:$0xff]
          %v1073 = vld [vmem:[%s4 + $0x40] sm:$0xff]
          %v1074 = vld [vmem:[%s4 + $0x48] sm:$0xff]
          %v1075 = vld [vmem:[%s4 + $0x50] sm:$0xff]
          %v1076 = vld [vmem:[%s4 + $0x58] sm:$0xff]
          %v1077 = vld [vmem:[%s4 + $0x60] sm:$0xff]
          %v1078 = vld [vmem:[%s4 + $0x68] sm:$0xff]
          %v1079 = vld [vmem:[%s4 + $0x70] sm:$0xff]
          %v1080 = vld [vmem:[%s4 + $0x78] sm:$0xff]
          %v1081 = vld [vmem:[%s4 + $0x80] sm:$0xff]
          %v1082 = vld [vmem:[%s4 + $0x88] sm:$0xff]
          %v1083 = vld [vmem:[%s4 + $0x90] sm:$0xff]
          %v1084 = vld [vmem:[%s4 + $0x98] sm:$0xff]
          %v1085 = vld [vmem:[%s4 + $0xa0] sm:$0xff]
          %v1086 = vld [vmem:[%s4 + $0xa8] sm:$0xff]
          %v1087 = vld [vmem:[%s4 + $0xb0] sm:$0xff]
          %v1088 = vld [vmem:[%s4 + $0xb8] sm:$0xff]
          %v1089 = vld [vmem:[%s4 + $0xc0] sm:$0xff]
          %v1090 = vld [vmem:[%s4 + $0xc8] sm:$0xff]
          %v1091 = vld [vmem:[%s4 + $0xd0] sm:$0xff]
          %v1092 = vld [vmem:[%s4 + $0xd8] sm:$0xff]
          %v1093 = vld [vmem:[%s4 + $0xe0] sm:$0xff]
          %v1094 = vld [vmem:[%s4 + $0xe8] sm:$0xff]
          %v1095 = vld [vmem:[%s4 + $0xf0] sm:$0xff]
          %v1096 = vld [vmem:[%s4 + $0xf8] sm:$0xff]
          %v1097 = vld [vmem:[%s4 + $0x100] sm:$0xff]
          %v1098 = vld [vmem:[%s4 + $0x108] sm:$0xff]
          %v1099 = vld [vmem:[%s4 + $0x110] sm:$0xff]
          %v1100 = vld [vmem:[%s4 + $0x118] sm:$0xff]
          %v1101 = vld [vmem:[%s4 + $0x120] sm:$0xff]
          %v1102 = vld [vmem:[%s4 + $0x128] sm:$0xff]
          %v1103 = vld [vmem:[%s4 + $0x130] sm:$0xff]
          %v1104 = vld [vmem:[%s4 + $0x138] sm:$0xff]
          %v1105 = vld [vmem:[%s4 + $0x140] sm:$0xff]
          %v1106 = vld [vmem:[%s4 + $0x148] sm:$0xff]
          %v1107 = vld [vmem:[%s4 + $0x150] sm:$0xff]
          %v1108 = vld [vmem:[%s4 + $0x158] sm:$0xff]
          %v1109 = vld [vmem:[%s4 + $0x160] sm:$0xff]
          %v1110 = vld [vmem:[%s4 + $0x168] sm:$0xff]
          %v1111 = vld [vmem:[%s4 + $0x170] sm:$0xff]
          %v1112 = vld [vmem:[%s4 + $0x178] sm:$0xff]
          %v1113 = vld [vmem:[%s4 + $0x180] sm:$0xff]
          %v1114 = vld [vmem:[%s4 + $0x188] sm:$0xff]
          %v1115 = vld [vmem:[%s4 + $0x190] sm:$0xff]
          %v1116 = vld [vmem:[%s4 + $0x198] sm:$0xff]
          %v1117 = vld [vmem:[%s4 + $0x1a0] sm:$0xff]
          %v1118 = vld [vmem:[%s4 + $0x1a8] sm:$0xff]
          %v1119 = vld [vmem:[%s4 + $0x1b0] sm:$0xff]
          %v1120 = vld [vmem:[%s4 + $0x1b8] sm:$0xff]
          %v1121 = vld [vmem:[%s4 + $0x1c0] sm:$0xff]
          %v1122 = vld [vmem:[%s4 + $0x1c8] sm:$0xff]
          %v1123 = vld [vmem:[%s4 + $0x1d0] sm:$0xff]
          %v1124 = vld [vmem:[%s4 + $0x1d8] sm:$0xff]
          %v1125 = vld [vmem:[%s4 + $0x1e0] sm:$0xff]
          %v1126 = vld [vmem:[%s4 + $0x1e8] sm:$0xff]
          %v1127 = vld [vmem:[%s4 + $0x1f0] sm:$0xff]
          %v1128 = vld [vmem:[%s4 + $0x1f8] sm:$0xff]
          %v1129 = vld [vmem:[%s5] sm:$0xff]
          %v1194 = vunpack.c.l.b16 %v1065
          %v1195 = vunpack.c.h.b16 %v1065
          %v1196 = vunpack.c.l.b16 %v1066
          %v1197 = vunpack.c.h.b16 %v1066
          %v1198 = vunpack.c.l.b16 %v1067
          %v1199 = vunpack.c.h.b16 %v1067
          %v1200 = vunpack.c.l.b16 %v1068
          %v1201 = vunpack.c.h.b16 %v1068
          %v1202 = vunpack.c.l.b16 %v1069
          %v1203 = vunpack.c.h.b16 %v1069
          %v1204 = vunpack.c.l.b16 %v1070
          %v1205 = vunpack.c.h.b16 %v1070
          %v1206 = vunpack.c.l.b16 %v1071
          %v1207 = vunpack.c.h.b16 %v1071
          %v1208 = vunpack.c.l.b16 %v1072
          %v1209 = vunpack.c.h.b16 %v1072
          %v1210 = vunpack.c.l.b16 %v1073
          %v1211 = vunpack.c.h.b16 %v1073
          %v1212 = vunpack.c.l.b16 %v1074
          %v1213 = vunpack.c.h.b16 %v1074
          %v1214 = vunpack.c.l.b16 %v1075
          %v1215 = vunpack.c.h.b16 %v1075
          %v1216 = vunpack.c.l.b16 %v1076
          %v1217 = vunpack.c.h.b16 %v1076
          %v1218 = vunpack.c.l.b16 %v1077
          %v1219 = vunpack.c.h.b16 %v1077
          %v1220 = vunpack.c.l.b16 %v1078
          %v1221 = vunpack.c.h.b16 %v1078
          %v1222 = vunpack.c.l.b16 %v1079
          %v1223 = vunpack.c.h.b16 %v1079
          %v1224 = vunpack.c.l.b16 %v1080
          %v1225 = vunpack.c.h.b16 %v1080
          %v1226 = vunpack.c.l.b16 %v1081
          %v1227 = vunpack.c.h.b16 %v1081
          %v1228 = vunpack.c.l.b16 %v1082
          %v1229 = vunpack.c.h.b16 %v1082
          %v1230 = vunpack.c.l.b16 %v1083
          %v1231 = vunpack.c.h.b16 %v1083
          %v1232 = vunpack.c.l.b16 %v1084
          %v1233 = vunpack.c.h.b16 %v1084
          %v1234 = vunpack.c.l.b16 %v1085
          %v1235 = vunpack.c.h.b16 %v1085
          %v1236 = vunpack.c.l.b16 %v1086
          %v1237 = vunpack.c.h.b16 %v1086
          %v1238 = vunpack.c.l.b16 %v1087
          %v1239 = vunpack.c.h.b16 %v1087
          %v1240 = vunpack.c.l.b16 %v1088
          %v1241 = vunpack.c.h.b16 %v1088
          %v1242 = vunpack.c.l.b16 %v1089
          %v1243 = vunpack.c.h.b16 %v1089
          %v1244 = vunpack.c.l.b16 %v1090
          %v1245 = vunpack.c.h.b16 %v1090
          %v1246 = vunpack.c.l.b16 %v1091
          %v1247 = vunpack.c.h.b16 %v1091
          %v1248 = vunpack.c.l.b16 %v1092
          %v1249 = vunpack.c.h.b16 %v1092
          %v1250 = vunpack.c.l.b16 %v1093
          %v1251 = vunpack.c.h.b16 %v1093
          %v1252 = vunpack.c.l.b16 %v1094
          %v1253 = vunpack.c.h.b16 %v1094
          %v1254 = vunpack.c.l.b16 %v1095
          %v1255 = vunpack.c.h.b16 %v1095
          %v1256 = vunpack.c.l.b16 %v1096
          %v1257 = vunpack.c.h.b16 %v1096
          %v1258 = vunpack.c.l.b16 %v1097
          %v1259 = vunpack.c.h.b16 %v1097
          %v1260 = vunpack.c.l.b16 %v1098
          %v1261 = vunpack.c.h.b16 %v1098
          %v1262 = vunpack.c.l.b16 %v1099
          %v1263 = vunpack.c.h.b16 %v1099
          %v1264 = vunpack.c.l.b16 %v1100
          %v1265 = vunpack.c.h.b16 %v1100
          %v1266 = vunpack.c.l.b16 %v1101
          %v1267 = vunpack.c.h.b16 %v1101
          %v1268 = vunpack.c.l.b16 %v1102
          %v1269 = vunpack.c.h.b16 %v1102
          %v1270 = vunpack.c.l.b16 %v1103
          %v1271 = vunpack.c.h.b16 %v1103
          %v1272 = vunpack.c.l.b16 %v1104
          %v1273 = vunpack.c.h.b16 %v1104
          %v1274 = vunpack.c.l.b16 %v1105
          %v1275 = vunpack.c.h.b16 %v1105
          %v1276 = vunpack.c.l.b16 %v1106
          %v1277 = vunpack.c.h.b16 %v1106
          %v1278 = vunpack.c.l.b16 %v1107
          %v1279 = vunpack.c.h.b16 %v1107
          %v1280 = vunpack.c.l.b16 %v1108
          %v1281 = vunpack.c.h.b16 %v1108
          %v1282 = vunpack.c.l.b16 %v1109
          %v1283 = vunpack.c.h.b16 %v1109
          %v1284 = vunpack.c.l.b16 %v1110
          %v1285 = vunpack.c.h.b16 %v1110
          %v1286 = vunpack.c.l.b16 %v1111
          %v1287 = vunpack.c.h.b16 %v1111
          %v1288 = vunpack.c.l.b16 %v1112
          %v1289 = vunpack.c.h.b16 %v1112
          %v1290 = vunpack.c.l.b16 %v1113
          %v1291 = vunpack.c.h.b16 %v1113
          %v1292 = vunpack.c.l.b16 %v1114
          %v1293 = vunpack.c.h.b16 %v1114
          %v1294 = vunpack.c.l.b16 %v1115
          %v1295 = vunpack.c.h.b16 %v1115
          %v1296 = vunpack.c.l.b16 %v1116
          %v1297 = vunpack.c.h.b16 %v1116
          %v1298 = vunpack.c.l.b16 %v1117
          %v1299 = vunpack.c.h.b16 %v1117
          %v1300 = vunpack.c.l.b16 %v1118
          %v1301 = vunpack.c.h.b16 %v1118
          %v1302 = vunpack.c.l.b16 %v1119
          %v1303 = vunpack.c.h.b16 %v1119
          %v1304 = vunpack.c.l.b16 %v1120
          %v1305 = vunpack.c.h.b16 %v1120
          %v1306 = vunpack.c.l.b16 %v1121
          %v1307 = vunpack.c.h.b16 %v1121
          %v1308 = vunpack.c.l.b16 %v1122
          %v1309 = vunpack.c.h.b16 %v1122
          %v1310 = vunpack.c.l.b16 %v1123
          %v1311 = vunpack.c.h.b16 %v1123
          %v1312 = vunpack.c.l.b16 %v1124
          %v1313 = vunpack.c.h.b16 %v1124
          %v1314 = vunpack.c.l.b16 %v1125
          %v1315 = vunpack.c.h.b16 %v1125
          %v1316 = vunpack.c.l.b16 %v1126
          %v1317 = vunpack.c.h.b16 %v1126
          %v1318 = vunpack.c.l.b16 %v1127
          %v1319 = vunpack.c.h.b16 %v1127
          %v1320 = vunpack.c.l.b16 %v1128
          %v1321 = vunpack.c.h.b16 %v1128
          %v1322 = vpack.c.b16 %v1202, %v1194
          %v1323 = vpack.c.b16 %v1203, %v1195
          %v1324 = vpack.c.b16 %v1204, %v1196
          %v1325 = vpack.c.b16 %v1205, %v1197
          %v1326 = vpack.c.b16 %v1206, %v1198
          %v1327 = vpack.c.b16 %v1207, %v1199
          %v1328 = vpack.c.b16 %v1208, %v1200
          %v1329 = vpack.c.b16 %v1209, %v1201
          %v1330 = vpack.c.b16 %v1218, %v1210
          %v1331 = vpack.c.b16 %v1219, %v1211
          %v1332 = vpack.c.b16 %v1220, %v1212
          %v1333 = vpack.c.b16 %v1221, %v1213
          %v1334 = vpack.c.b16 %v1222, %v1214
          %v1335 = vpack.c.b16 %v1223, %v1215
          %v1336 = vpack.c.b16 %v1224, %v1216
          %v1337 = vpack.c.b16 %v1225, %v1217
          %v1338 = vpack.c.b16 %v1234, %v1226
          %v1339 = vpack.c.b16 %v1235, %v1227
          %v1340 = vpack.c.b16 %v1236, %v1228
          %v1341 = vpack.c.b16 %v1237, %v1229
          %v1342 = vpack.c.b16 %v1238, %v1230
          %v1343 = vpack.c.b16 %v1239, %v1231
          %v1344 = vpack.c.b16 %v1240, %v1232
          %v1345 = vpack.c.b16 %v1241, %v1233
          %v1346 = vpack.c.b16 %v1250, %v1242
          %v1347 = vpack.c.b16 %v1251, %v1243
          %v1348 = vpack.c.b16 %v1252, %v1244
          %v1349 = vpack.c.b16 %v1253, %v1245
          %v1350 = vpack.c.b16 %v1254, %v1246
          %v1351 = vpack.c.b16 %v1255, %v1247
          %v1352 = vpack.c.b16 %v1256, %v1248
          %v1353 = vpack.c.b16 %v1257, %v1249
          %v1354 = vpack.c.b16 %v1266, %v1258
          %v1355 = vpack.c.b16 %v1267, %v1259
          %v1356 = vpack.c.b16 %v1268, %v1260
          %v1357 = vpack.c.b16 %v1269, %v1261
          %v1358 = vpack.c.b16 %v1270, %v1262
          %v1359 = vpack.c.b16 %v1271, %v1263
          %v1360 = vpack.c.b16 %v1272, %v1264
          %v1361 = vpack.c.b16 %v1273, %v1265
          %v1362 = vpack.c.b16 %v1282, %v1274
          %v1363 = vpack.c.b16 %v1283, %v1275
          %v1364 = vpack.c.b16 %v1284, %v1276
          %v1365 = vpack.c.b16 %v1285, %v1277
          %v1366 = vpack.c.b16 %v1286, %v1278
          %v1367 = vpack.c.b16 %v1287, %v1279
          %v1368 = vpack.c.b16 %v1288, %v1280
          %v1369 = vpack.c.b16 %v1289, %v1281
          %v1370 = vpack.c.b16 %v1298, %v1290
          %v1371 = vpack.c.b16 %v1299, %v1291
          %v1372 = vpack.c.b16 %v1300, %v1292
          %v1373 = vpack.c.b16 %v1301, %v1293
          %v1374 = vpack.c.b16 %v1302, %v1294
          %v1375 = vpack.c.b16 %v1303, %v1295
          %v1376 = vpack.c.b16 %v1304, %v1296
          %v1377 = vpack.c.b16 %v1305, %v1297
          %v1378 = vpack.c.b16 %v1314, %v1306
          %v1379 = vpack.c.b16 %v1315, %v1307
          %v1380 = vpack.c.b16 %v1316, %v1308
          %v1381 = vpack.c.b16 %v1317, %v1309
          %v1382 = vpack.c.b16 %v1318, %v1310
          %v1383 = vpack.c.b16 %v1319, %v1311
          %v1384 = vpack.c.b16 %v1320, %v1312
          %v1385 = vpack.c.b16 %v1321, %v1313
          %v1451 = vlaneseq
          %v1452 = vshrl.u32 %v1451, 7
          %v1453 = vsub.s32 0, %v1452
          %v1454 = vrot.slane %v1129, %v1453
          %v1455 = vlaneseq
          %v1456 = vshrl.u32 %v1455, 7
          %v1457 = vsub.s32 1, %v1456
          %v1458 = vrot.slane %v1129, %v1457
          %v1459 = vlaneseq
          %v1460 = vshrl.u32 %v1459, 7
          %v1461 = vsub.s32 2, %v1460
          %v1462 = vrot.slane %v1129, %v1461
          %v1463 = vlaneseq
          %v1464 = vshrl.u32 %v1463, 7
          %v1465 = vsub.s32 3, %v1464
          %v1466 = vrot.slane %v1129, %v1465
          %v1467 = vlaneseq
          %v1468 = vshrl.u32 %v1467, 7
          %v1469 = vsub.s32 4, %v1468
          %v1470 = vrot.slane %v1129, %v1469
          %v1471 = vlaneseq
          %v1472 = vshrl.u32 %v1471, 7
          %v1473 = vsub.s32 5, %v1472
          %v1474 = vrot.slane %v1129, %v1473
          %v1475 = vlaneseq
          %v1476 = vshrl.u32 %v1475, 7
          %v1477 = vsub.s32 6, %v1476
          %v1478 = vrot.slane %v1129, %v1477
          %v1479 = vlaneseq
          %v1480 = vshrl.u32 %v1479, 7
          %v1481 = vsub.s32 7, %v1480
          %v1482 = vrot.slane %v1129, %v1481
          %1491 = vmatprep.subr.bf16.mxu0 %v1379
          %1492 = vmatpush1.bf16.msra.mxu0 %v1378
          %1493 = vmatprep.subr.bf16.mxu0 %v1371
          %1494 = vmatpush1.bf16.msra.mxu0 %v1370
          %1495 = vmatprep.subr.bf16.mxu0 %v1363
          %1496 = vmatpush1.bf16.msra.mxu0 %v1362
          %1497 = vmatprep.subr.bf16.mxu0 %v1355
          %1498 = vmatpush1.bf16.msra.mxu0 %v1354
          %1499 = vmatprep.subr.bf16.mxu0 %v1347
          %1500 = vmatpush1.bf16.msra.mxu0 %v1346
          %1501 = vmatprep.subr.bf16.mxu0 %v1339
          %1502 = vmatpush1.bf16.msra.mxu0 %v1338
          %1503 = vmatprep.subr.bf16.mxu0 %v1331
          %1504 = vmatpush1.bf16.msra.mxu0 %v1330
          %1505 = vmatprep.subr.bf16.mxu0 %v1323
          %1506 = vmatpush1.bf16.msra.mxu0 %v1322
          %1507 = vmatprep.subr.bf16.mxu0 0
          %1508 = vmatpush2.bf16.msra.mxu0 0
          %1509 = vmatprep.subr.bf16.mxu0 0
          %1510 = vmatpush2.bf16.msra.mxu0 0
          %1511 = vmatprep.subr.bf16.mxu0 0
          %1512 = vmatpush2.bf16.msra.mxu0 0
          %1513 = vmatprep.subr.bf16.mxu0 0
          %1514 = vmatpush2.bf16.msra.mxu0 0
          %1515 = vmatprep.subr.bf16.mxu0 0
          %1516 = vmatpush2.bf16.msra.mxu0 0
          %1517 = vmatprep.subr.bf16.mxu0 0
          %1518 = vmatpush2.bf16.msra.mxu0 0
          %1519 = vmatprep.subr.bf16.mxu0 0
          %1520 = vmatpush2.bf16.msra.mxu0 0
          %1521 = vmatprep.subr.bf16.mxu0 0
          %1522 = vmatpush2.bf16.msra.mxu0 0
          %1523 = vmatprep.mubr.bf16.mxu0 0
          %1524 = vmatmul.mubr.bf16.gmra.mxu0 %v1064
          %v1525 = vpop.f32.mrf.mxu0
          %v1526 = vadd.f32 %v1454, %v1525
          %v1527 = vpop.f32.mrf.mxu0
          %v1528 = vadd.f32 %v1458, %v1527
          %v1529 = vpop.f32.mrf.mxu0
          %v1530 = vpop.f32.mrf.mxu0
          %1531 = vdwg.mxu0
          %1532 = vmatprep.subr.bf16.mxu0 %v1381
          %1533 = vmatpush1.bf16.msra.mxu0 %v1380
          %1534 = vmatprep.subr.bf16.mxu0 %v1373
          %1535 = vmatpush1.bf16.msra.mxu0 %v1372
          %1536 = vmatprep.subr.bf16.mxu0 %v1365
          %1537 = vmatpush1.bf16.msra.mxu0 %v1364
          %1538 = vmatprep.subr.bf16.mxu0 %v1357
          %1539 = vmatpush1.bf16.msra.mxu0 %v1356
          %1540 = vmatprep.subr.bf16.mxu0 %v1349
          %1541 = vmatpush1.bf16.msra.mxu0 %v1348
          %1542 = vmatprep.subr.bf16.mxu0 %v1341
          %1543 = vmatpush1.bf16.msra.mxu0 %v1340
          %1544 = vmatprep.subr.bf16.mxu0 %v1333
          %1545 = vmatpush1.bf16.msra.mxu0 %v1332
          %1546 = vmatprep.subr.bf16.mxu0 %v1325
          %1547 = vmatpush1.bf16.msra.mxu0 %v1324
          %1548 = vmatprep.subr.bf16.mxu0 0
          %1549 = vmatpush2.bf16.msra.mxu0 0
          %1550 = vmatprep.subr.bf16.mxu0 0
          %1551 = vmatpush2.bf16.msra.mxu0 0
          %1552 = vmatprep.subr.bf16.mxu0 0
          %1553 = vmatpush2.bf16.msra.mxu0 0
          %1554 = vmatprep.subr.bf16.mxu0 0
          %1555 = vmatpush2.bf16.msra.mxu0 0
          %1556 = vmatprep.subr.bf16.mxu0 0
          %1557 = vmatpush2.bf16.msra.mxu0 0
          %1558 = vmatprep.subr.bf16.mxu0 0
          %1559 = vmatpush2.bf16.msra.mxu0 0
          %1560 = vmatprep.subr.bf16.mxu0 0
          %1561 = vmatpush2.bf16.msra.mxu0 0
          %1562 = vmatprep.subr.bf16.mxu0 0
          %1563 = vmatpush2.bf16.msra.mxu0 0
          %1564 = vmatprep.mubr.bf16.mxu0 0
          %1565 = vmatmul.mubr.bf16.gmra.mxu0 %v1064
          %v1566 = vpop.f32.mrf.mxu0
          %v1567 = vadd.f32 %v1462, %v1566
          %v1568 = vpop.f32.mrf.mxu0
          %v1569 = vadd.f32 %v1466, %v1568
          %v1570 = vpop.f32.mrf.mxu0
          %v1571 = vpop.f32.mrf.mxu0
          %1572 = vdwg.mxu0
          %1573 = vmatprep.subr.bf16.mxu0 %v1383
          %1574 = vmatpush1.bf16.msra.mxu0 %v1382
          %1575 = vmatprep.subr.bf16.mxu0 %v1375
          %1576 = vmatpush1.bf16.msra.mxu0 %v1374
          %1577 = vmatprep.subr.bf16.mxu0 %v1367
          %1578 = vmatpush1.bf16.msra.mxu0 %v1366
          %1579 = vmatprep.subr.bf16.mxu0 %v1359
          %1580 = vmatpush1.bf16.msra.mxu0 %v1358
          %1581 = vmatprep.subr.bf16.mxu0 %v1351
          %1582 = vmatpush1.bf16.msra.mxu0 %v1350
          %1583 = vmatprep.subr.bf16.mxu0 %v1343
          %1584 = vmatpush1.bf16.msra.mxu0 %v1342
          %1585 = vmatprep.subr.bf16.mxu0 %v1335
          %1586 = vmatpush1.bf16.msra.mxu0 %v1334
          %1587 = vmatprep.subr.bf16.mxu0 %v1327
          %1588 = vmatpush1.bf16.msra.mxu0 %v1326
          %1589 = vmatprep.subr.bf16.mxu0 0
          %1590 = vmatpush2.bf16.msra.mxu0 0
          %1591 = vmatprep.subr.bf16.mxu0 0
          %1592 = vmatpush2.bf16.msra.mxu0 0
          %1593 = vmatprep.subr.bf16.mxu0 0
          %1594 = vmatpush2.bf16.msra.mxu0 0
          %1595 = vmatprep.subr.bf16.mxu0 0
          %1596 = vmatpush2.bf16.msra.mxu0 0
          %1597 = vmatprep.subr.bf16.mxu0 0
          %1598 = vmatpush2.bf16.msra.mxu0 0
          %1599 = vmatprep.subr.bf16.mxu0 0
          %1600 = vmatpush2.bf16.msra.mxu0 0
          %1601 = vmatprep.subr.bf16.mxu0 0
          %1602 = vmatpush2.bf16.msra.mxu0 0
          %1603 = vmatprep.subr.bf16.mxu0 0
          %1604 = vmatpush2.bf16.msra.mxu0 0
          %1605 = vmatprep.mubr.bf16.mxu0 0
          %1606 = vmatmul.mubr.bf16.gmra.mxu0 %v1064
          %v1607 = vpop.f32.mrf.mxu0
          %v1608 = vadd.f32 %v1470, %v1607
          %v1609 = vpop.f32.mrf.mxu0
          %v1610 = vadd.f32 %v1474, %v1609
          %v1611 = vpop.f32.mrf.mxu0
          %v1612 = vpop.f32.mrf.mxu0
          %1613 = vdwg.mxu0
          %1614 = vmatprep.subr.bf16.mxu0 %v1385
          %1615 = vmatpush1.bf16.msra.mxu0 %v1384
          %1616 = vmatprep.subr.bf16.mxu0 %v1377
          %1617 = vmatpush1.bf16.msra.mxu0 %v1376
          %1618 = vmatprep.subr.bf16.mxu0 %v1369
          %1619 = vmatpush1.bf16.msra.mxu0 %v1368
          %1620 = vmatprep.subr.bf16.mxu0 %v1361
          %1621 = vmatpush1.bf16.msra.mxu0 %v1360
          %1622 = vmatprep.subr.bf16.mxu0 %v1353
          %1623 = vmatpush1.bf16.msra.mxu0 %v1352
          %1624 = vmatprep.subr.bf16.mxu0 %v1345
          %1625 = vmatpush1.bf16.msra.mxu0 %v1344
          %1626 = vmatprep.subr.bf16.mxu0 %v1337
          %1627 = vmatpush1.bf16.msra.mxu0 %v1336
          %1628 = vmatprep.subr.bf16.mxu0 %v1329
          %1629 = vmatpush1.bf16.msra.mxu0 %v1328
          %1630 = vmatprep.subr.bf16.mxu0 0
          %1631 = vmatpush2.bf16.msra.mxu0 0
          %1632 = vmatprep.subr.bf16.mxu0 0
          %1633 = vmatpush2.bf16.msra.mxu0 0
          %1634 = vmatprep.subr.bf16.mxu0 0
          %1635 = vmatpush2.bf16.msra.mxu0 0
          %1636 = vmatprep.subr.bf16.mxu0 0
          %1637 = vmatpush2.bf16.msra.mxu0 0
          %1638 = vmatprep.subr.bf16.mxu0 0
          %1639 = vmatpush2.bf16.msra.mxu0 0
          %1640 = vmatprep.subr.bf16.mxu0 0
          %1641 = vmatpush2.bf16.msra.mxu0 0
          %1642 = vmatprep.subr.bf16.mxu0 0
          %1643 = vmatpush2.bf16.msra.mxu0 0
          %1644 = vmatprep.subr.bf16.mxu0 0
          %1645 = vmatpush2.bf16.msra.mxu0 0
          %1646 = vmatprep.mubr.bf16.mxu0 0
          %1647 = vmatmul.mubr.bf16.gmra.mxu0 %v1064
          %v1648 = vpop.f32.mrf.mxu0
          %v1649 = vadd.f32 %v1478, %v1648
          %v1650 = vpop.f32.mrf.mxu0
          %v1651 = vadd.f32 %v1482, %v1650
          %v1652 = vpop.f32.mrf.mxu0
          %v1653 = vpop.f32.mrf.mxu0
          %1654 = vdwg.mxu0
          %v1655 = vpack.c.bf16 %v1526, %v1526
          %v1656 = vpack.c.bf16 %v1528, %v1528
          %v1657 = vpack.c.bf16 %v1567, %v1567
          %v1658 = vpack.c.bf16 %v1569, %v1569
          %v1659 = vpack.c.bf16 %v1608, %v1608
          %v1660 = vpack.c.bf16 %v1610, %v1610
          %v1661 = vpack.c.bf16 %v1649, %v1649
          %v1662 = vpack.c.bf16 %v1651, %v1651
          %v1663 = vld [vmem:[#allocation3] sm:$0xf]
          %v1664 = vld [vmem:[#allocation3 + $0x4] sm:$0xf]
          %v1665 = vld [vmem:[#allocation3 + $0x8] sm:$0xf]
          %v1666 = vld [vmem:[#allocation3 + $0xc] sm:$0xf]
          %v1667 = vld [vmem:[#allocation3 + $0x10] sm:$0xf]
          %v1668 = vld [vmem:[#allocation3 + $0x14] sm:$0xf]
          %v1669 = vld [vmem:[#allocation3 + $0x18] sm:$0xf]
          %v1670 = vld [vmem:[#allocation3 + $0x1c] sm:$0xf]
          %v1671 = vld [vmem:[#allocation3 + $0x20] sm:$0xf]
          %v1672 = vld [vmem:[#allocation3 + $0x24] sm:$0xf]
          %v1673 = vld [vmem:[#allocation3 + $0x28] sm:$0xf]
          %v1674 = vld [vmem:[#allocation3 + $0x2c] sm:$0xf]
          %v1675 = vld [vmem:[#allocation3 + $0x30] sm:$0xf]
          %v1676 = vld [vmem:[#allocation3 + $0x34] sm:$0xf]
          %v1677 = vld [vmem:[#allocation3 + $0x38] sm:$0xf]
          %v1678 = vld [vmem:[#allocation3 + $0x3c] sm:$0xf]
          %v1679 = vld [vmem:[#allocation3 + $0x40] sm:$0xf]
          %v1680 = vld [vmem:[#allocation3 + $0x44] sm:$0xf]
          %v1681 = vld [vmem:[#allocation3 + $0x48] sm:$0xf]
          %v1682 = vld [vmem:[#allocation3 + $0x4c] sm:$0xf]
          %v1683 = vld [vmem:[#allocation3 + $0x50] sm:$0xf]
          %v1684 = vld [vmem:[#allocation3 + $0x54] sm:$0xf]
          %v1685 = vld [vmem:[#allocation3 + $0x58] sm:$0xf]
          %v1686 = vld [vmem:[#allocation3 + $0x5c] sm:$0xf]
          %v1687 = vld [vmem:[#allocation3 + $0x60] sm:$0xf]
          %v1688 = vld [vmem:[#allocation3 + $0x64] sm:$0xf]
          %v1689 = vld [vmem:[#allocation3 + $0x68] sm:$0xf]
          %v1690 = vld [vmem:[#allocation3 + $0x6c] sm:$0xf]
          %v1691 = vld [vmem:[#allocation3 + $0x70] sm:$0xf]
          %v1692 = vld [vmem:[#allocation3 + $0x74] sm:$0xf]
          %v1693 = vld [vmem:[#allocation3 + $0x78] sm:$0xf]
          %v1694 = vld [vmem:[#allocation3 + $0x7c] sm:$0xf]
          %v1695 = vld [vmem:[#allocation3 + $0x80] sm:$0xf]
          %v1696 = vld [vmem:[#allocation3 + $0x84] sm:$0xf]
          %v1697 = vld [vmem:[#allocation3 + $0x88] sm:$0xf]
          %v1698 = vld [vmem:[#allocation3 + $0x8c] sm:$0xf]
          %v1699 = vld [vmem:[#allocation3 + $0x90] sm:$0xf]
          %v1700 = vld [vmem:[#allocation3 + $0x94] sm:$0xf]
          %v1701 = vld [vmem:[#allocation3 + $0x98] sm:$0xf]
          %v1702 = vld [vmem:[#allocation3 + $0x9c] sm:$0xf]
          %v1703 = vld [vmem:[#allocation3 + $0xa0] sm:$0xf]
          %v1704 = vld [vmem:[#allocation3 + $0xa4] sm:$0xf]
          %v1705 = vld [vmem:[#allocation3 + $0xa8] sm:$0xf]
          %v1706 = vld [vmem:[#allocation3 + $0xac] sm:$0xf]
          %v1707 = vld [vmem:[#allocation3 + $0xb0] sm:$0xf]
          %v1708 = vld [vmem:[#allocation3 + $0xb4] sm:$0xf]
          %v1709 = vld [vmem:[#allocation3 + $0xb8] sm:$0xf]
          %v1710 = vld [vmem:[#allocation3 + $0xbc] sm:$0xf]
          %v1711 = vld [vmem:[#allocation3 + $0xc0] sm:$0xf]
          %v1712 = vld [vmem:[#allocation3 + $0xc4] sm:$0xf]
          %v1713 = vld [vmem:[#allocation3 + $0xc8] sm:$0xf]
          %v1714 = vld [vmem:[#allocation3 + $0xcc] sm:$0xf]
          %v1715 = vld [vmem:[#allocation3 + $0xd0] sm:$0xf]
          %v1716 = vld [vmem:[#allocation3 + $0xd4] sm:$0xf]
          %v1717 = vld [vmem:[#allocation3 + $0xd8] sm:$0xf]
          %v1718 = vld [vmem:[#allocation3 + $0xdc] sm:$0xf]
          %v1719 = vld [vmem:[#allocation3 + $0xe0] sm:$0xf]
          %v1720 = vld [vmem:[#allocation3 + $0xe4] sm:$0xf]
          %v1721 = vld [vmem:[#allocation3 + $0xe8] sm:$0xf]
          %v1722 = vld [vmem:[#allocation3 + $0xec] sm:$0xf]
          %v1723 = vld [vmem:[#allocation3 + $0xf0] sm:$0xf]
          %v1724 = vld [vmem:[#allocation3 + $0xf4] sm:$0xf]
          %v1725 = vld [vmem:[#allocation3 + $0xf8] sm:$0xf]
          %v1726 = vld [vmem:[#allocation3 + $0xfc] sm:$0xf]
          %v1727 = vld [vmem:[#allocation3 + $0x100] sm:$0xf]
          %v1728 = vld [vmem:[#allocation3 + $0x104] sm:$0xf]
          %v1729 = vld [vmem:[#allocation3 + $0x108] sm:$0xf]
          %v1730 = vld [vmem:[#allocation3 + $0x10c] sm:$0xf]
          %v1731 = vld [vmem:[#allocation3 + $0x110] sm:$0xf]
          %v1732 = vld [vmem:[#allocation3 + $0x114] sm:$0xf]
          %v1733 = vld [vmem:[#allocation3 + $0x118] sm:$0xf]
          %v1734 = vld [vmem:[#allocation3 + $0x11c] sm:$0xf]
          %v1735 = vld [vmem:[#allocation3 + $0x120] sm:$0xf]
          %v1736 = vld [vmem:[#allocation3 + $0x124] sm:$0xf]
          %v1737 = vld [vmem:[#allocation3 + $0x128] sm:$0xf]
          %v1738 = vld [vmem:[#allocation3 + $0x12c] sm:$0xf]
          %v1739 = vld [vmem:[#allocation3 + $0x130] sm:$0xf]
          %v1740 = vld [vmem:[#allocation3 + $0x134] sm:$0xf]
          %v1741 = vld [vmem:[#allocation3 + $0x138] sm:$0xf]
          %v1742 = vld [vmem:[#allocation3 + $0x13c] sm:$0xf]
          %v1743 = vld [vmem:[#allocation3 + $0x140] sm:$0xf]
          %v1744 = vld [vmem:[#allocation3 + $0x144] sm:$0xf]
          %v1745 = vld [vmem:[#allocation3 + $0x148] sm:$0xf]
          %v1746 = vld [vmem:[#allocation3 + $0x14c] sm:$0xf]
          %v1747 = vld [vmem:[#allocation3 + $0x150] sm:$0xf]
          %v1748 = vld [vmem:[#allocation3 + $0x154] sm:$0xf]
          %v1749 = vld [vmem:[#allocation3 + $0x158] sm:$0xf]
          %v1750 = vld [vmem:[#allocation3 + $0x15c] sm:$0xf]
          %v1751 = vld [vmem:[#allocation3 + $0x160] sm:$0xf]
          %v1752 = vld [vmem:[#allocation3 + $0x164] sm:$0xf]
          %v1753 = vld [vmem:[#allocation3 + $0x168] sm:$0xf]
          %v1754 = vld [vmem:[#allocation3 + $0x16c] sm:$0xf]
          %v1755 = vld [vmem:[#allocation3 + $0x170] sm:$0xf]
          %v1756 = vld [vmem:[#allocation3 + $0x174] sm:$0xf]
          %v1757 = vld [vmem:[#allocation3 + $0x178] sm:$0xf]
          %v1758 = vld [vmem:[#allocation3 + $0x17c] sm:$0xf]
          %v1759 = vld [vmem:[#allocation3 + $0x180] sm:$0xf]
          %v1760 = vld [vmem:[#allocation3 + $0x184] sm:$0xf]
          %v1761 = vld [vmem:[#allocation3 + $0x188] sm:$0xf]
          %v1762 = vld [vmem:[#allocation3 + $0x18c] sm:$0xf]
          %v1763 = vld [vmem:[#allocation3 + $0x190] sm:$0xf]
          %v1764 = vld [vmem:[#allocation3 + $0x194] sm:$0xf]
          %v1765 = vld [vmem:[#allocation3 + $0x198] sm:$0xf]
          %v1766 = vld [vmem:[#allocation3 + $0x19c] sm:$0xf]
          %v1767 = vld [vmem:[#allocation3 + $0x1a0] sm:$0xf]
          %v1768 = vld [vmem:[#allocation3 + $0x1a4] sm:$0xf]
          %v1769 = vld [vmem:[#allocation3 + $0x1a8] sm:$0xf]
          %v1770 = vld [vmem:[#allocation3 + $0x1ac] sm:$0xf]
          %v1771 = vld [vmem:[#allocation3 + $0x1b0] sm:$0xf]
          %v1772 = vld [vmem:[#allocation3 + $0x1b4] sm:$0xf]
          %v1773 = vld [vmem:[#allocation3 + $0x1b8] sm:$0xf]
          %v1774 = vld [vmem:[#allocation3 + $0x1bc] sm:$0xf]
          %v1775 = vld [vmem:[#allocation3 + $0x1c0] sm:$0xf]
          %v1776 = vld [vmem:[#allocation3 + $0x1c4] sm:$0xf]
          %v1777 = vld [vmem:[#allocation3 + $0x1c8] sm:$0xf]
          %v1778 = vld [vmem:[#allocation3 + $0x1cc] sm:$0xf]
          %v1779 = vld [vmem:[#allocation3 + $0x1d0] sm:$0xf]
          %v1780 = vld [vmem:[#allocation3 + $0x1d4] sm:$0xf]
          %v1781 = vld [vmem:[#allocation3 + $0x1d8] sm:$0xf]
          %v1782 = vld [vmem:[#allocation3 + $0x1dc] sm:$0xf]
          %v1783 = vld [vmem:[#allocation3 + $0x1e0] sm:$0xf]
          %v1784 = vld [vmem:[#allocation3 + $0x1e4] sm:$0xf]
          %v1785 = vld [vmem:[#allocation3 + $0x1e8] sm:$0xf]
          %v1786 = vld [vmem:[#allocation3 + $0x1ec] sm:$0xf]
          %v1787 = vld [vmem:[#allocation3 + $0x1f0] sm:$0xf]
          %v1788 = vld [vmem:[#allocation3 + $0x1f4] sm:$0xf]
          %v1789 = vld [vmem:[#allocation3 + $0x1f8] sm:$0xf]
          %v1790 = vld [vmem:[#allocation3 + $0x1fc] sm:$0xf]
          %v1791 = vld [vmem:[%s7] sm:$0x1]
          %v1920 = vunpack.c.l.b16 %v1663
          %v1921 = vunpack.c.l.b16 %v1664
          %v1922 = vunpack.c.l.b16 %v1665
          %v1923 = vunpack.c.l.b16 %v1666
          %v1924 = vunpack.c.l.b16 %v1667
          %v1925 = vunpack.c.l.b16 %v1668
          %v1926 = vunpack.c.l.b16 %v1669
          %v1927 = vunpack.c.l.b16 %v1670
          %v1928 = vunpack.c.l.b16 %v1671
          %v1929 = vunpack.c.l.b16 %v1672
          %v1930 = vunpack.c.l.b16 %v1673
          %v1931 = vunpack.c.l.b16 %v1674
          %v1932 = vunpack.c.l.b16 %v1675
          %v1933 = vunpack.c.l.b16 %v1676
          %v1934 = vunpack.c.l.b16 %v1677
          %v1935 = vunpack.c.l.b16 %v1678
          %v1936 = vunpack.c.l.b16 %v1679
          %v1937 = vunpack.c.l.b16 %v1680
          %v1938 = vunpack.c.l.b16 %v1681
          %v1939 = vunpack.c.l.b16 %v1682
          %v1940 = vunpack.c.l.b16 %v1683
          %v1941 = vunpack.c.l.b16 %v1684
          %v1942 = vunpack.c.l.b16 %v1685
          %v1943 = vunpack.c.l.b16 %v1686
          %v1944 = vunpack.c.l.b16 %v1687
          %v1945 = vunpack.c.l.b16 %v1688
          %v1946 = vunpack.c.l.b16 %v1689
          %v1947 = vunpack.c.l.b16 %v1690
          %v1948 = vunpack.c.l.b16 %v1691
          %v1949 = vunpack.c.l.b16 %v1692
          %v1950 = vunpack.c.l.b16 %v1693
          %v1951 = vunpack.c.l.b16 %v1694
          %v1952 = vunpack.c.l.b16 %v1695
          %v1953 = vunpack.c.l.b16 %v1696
          %v1954 = vunpack.c.l.b16 %v1697
          %v1955 = vunpack.c.l.b16 %v1698
          %v1956 = vunpack.c.l.b16 %v1699
          %v1957 = vunpack.c.l.b16 %v1700
          %v1958 = vunpack.c.l.b16 %v1701
          %v1959 = vunpack.c.l.b16 %v1702
          %v1960 = vunpack.c.l.b16 %v1703
          %v1961 = vunpack.c.l.b16 %v1704
          %v1962 = vunpack.c.l.b16 %v1705
          %v1963 = vunpack.c.l.b16 %v1706
          %v1964 = vunpack.c.l.b16 %v1707
          %v1965 = vunpack.c.l.b16 %v1708
          %v1966 = vunpack.c.l.b16 %v1709
          %v1967 = vunpack.c.l.b16 %v1710
          %v1968 = vunpack.c.l.b16 %v1711
          %v1969 = vunpack.c.l.b16 %v1712
          %v1970 = vunpack.c.l.b16 %v1713
          %v1971 = vunpack.c.l.b16 %v1714
          %v1972 = vunpack.c.l.b16 %v1715
          %v1973 = vunpack.c.l.b16 %v1716
          %v1974 = vunpack.c.l.b16 %v1717
          %v1975 = vunpack.c.l.b16 %v1718
          %v1976 = vunpack.c.l.b16 %v1719
          %v1977 = vunpack.c.l.b16 %v1720
          %v1978 = vunpack.c.l.b16 %v1721
          %v1979 = vunpack.c.l.b16 %v1722
          %v1980 = vunpack.c.l.b16 %v1723
          %v1981 = vunpack.c.l.b16 %v1724
          %v1982 = vunpack.c.l.b16 %v1725
          %v1983 = vunpack.c.l.b16 %v1726
          %v1984 = vunpack.c.l.b16 %v1727
          %v1985 = vunpack.c.l.b16 %v1728
          %v1986 = vunpack.c.l.b16 %v1729
          %v1987 = vunpack.c.l.b16 %v1730
          %v1988 = vunpack.c.l.b16 %v1731
          %v1989 = vunpack.c.l.b16 %v1732
          %v1990 = vunpack.c.l.b16 %v1733
          %v1991 = vunpack.c.l.b16 %v1734
          %v1992 = vunpack.c.l.b16 %v1735
          %v1993 = vunpack.c.l.b16 %v1736
          %v1994 = vunpack.c.l.b16 %v1737
          %v1995 = vunpack.c.l.b16 %v1738
          %v1996 = vunpack.c.l.b16 %v1739
          %v1997 = vunpack.c.l.b16 %v1740
          %v1998 = vunpack.c.l.b16 %v1741
          %v1999 = vunpack.c.l.b16 %v1742
          %v2000 = vunpack.c.l.b16 %v1743
          %v2001 = vunpack.c.l.b16 %v1744
          %v2002 = vunpack.c.l.b16 %v1745
          %v2003 = vunpack.c.l.b16 %v1746
          %v2004 = vunpack.c.l.b16 %v1747
          %v2005 = vunpack.c.l.b16 %v1748
          %v2006 = vunpack.c.l.b16 %v1749
          %v2007 = vunpack.c.l.b16 %v1750
          %v2008 = vunpack.c.l.b16 %v1751
          %v2009 = vunpack.c.l.b16 %v1752
          %v2010 = vunpack.c.l.b16 %v1753
          %v2011 = vunpack.c.l.b16 %v1754
          %v2012 = vunpack.c.l.b16 %v1755
          %v2013 = vunpack.c.l.b16 %v1756
          %v2014 = vunpack.c.l.b16 %v1757
          %v2015 = vunpack.c.l.b16 %v1758
          %v2016 = vunpack.c.l.b16 %v1759
          %v2017 = vunpack.c.l.b16 %v1760
          %v2018 = vunpack.c.l.b16 %v1761
          %v2019 = vunpack.c.l.b16 %v1762
          %v2020 = vunpack.c.l.b16 %v1763
          %v2021 = vunpack.c.l.b16 %v1764
          %v2022 = vunpack.c.l.b16 %v1765
          %v2023 = vunpack.c.l.b16 %v1766
          %v2024 = vunpack.c.l.b16 %v1767
          %v2025 = vunpack.c.l.b16 %v1768
          %v2026 = vunpack.c.l.b16 %v1769
          %v2027 = vunpack.c.l.b16 %v1770
          %v2028 = vunpack.c.l.b16 %v1771
          %v2029 = vunpack.c.l.b16 %v1772
          %v2030 = vunpack.c.l.b16 %v1773
          %v2031 = vunpack.c.l.b16 %v1774
          %v2032 = vunpack.c.l.b16 %v1775
          %v2033 = vunpack.c.l.b16 %v1776
          %v2034 = vunpack.c.l.b16 %v1777
          %v2035 = vunpack.c.l.b16 %v1778
          %v2036 = vunpack.c.l.b16 %v1779
          %v2037 = vunpack.c.l.b16 %v1780
          %v2038 = vunpack.c.l.b16 %v1781
          %v2039 = vunpack.c.l.b16 %v1782
          %v2040 = vunpack.c.l.b16 %v1783
          %v2041 = vunpack.c.l.b16 %v1784
          %v2042 = vunpack.c.l.b16 %v1785
          %v2043 = vunpack.c.l.b16 %v1786
          %v2044 = vunpack.c.l.b16 %v1787
          %v2045 = vunpack.c.l.b16 %v1788
          %v2046 = vunpack.c.l.b16 %v1789
          %v2047 = vunpack.c.l.b16 %v1790
          %v2048 = vpack.c.b16 %v1921, %v1920
          %v2049 = vpack.c.b16 %v1923, %v1922
          %v2050 = vpack.c.b16 %v1925, %v1924
          %v2051 = vpack.c.b16 %v1927, %v1926
          %v2052 = vpack.c.b16 %v1929, %v1928
          %v2053 = vpack.c.b16 %v1931, %v1930
          %v2054 = vpack.c.b16 %v1933, %v1932
          %v2055 = vpack.c.b16 %v1935, %v1934
          %v2056 = vpack.c.b16 %v1937, %v1936
          %v2057 = vpack.c.b16 %v1939, %v1938
          %v2058 = vpack.c.b16 %v1941, %v1940
          %v2059 = vpack.c.b16 %v1943, %v1942
          %v2060 = vpack.c.b16 %v1945, %v1944
          %v2061 = vpack.c.b16 %v1947, %v1946
          %v2062 = vpack.c.b16 %v1949, %v1948
          %v2063 = vpack.c.b16 %v1951, %v1950
          %v2064 = vpack.c.b16 %v1953, %v1952
          %v2065 = vpack.c.b16 %v1955, %v1954
          %v2066 = vpack.c.b16 %v1957, %v1956
          %v2067 = vpack.c.b16 %v1959, %v1958
          %v2068 = vpack.c.b16 %v1961, %v1960
          %v2069 = vpack.c.b16 %v1963, %v1962
          %v2070 = vpack.c.b16 %v1965, %v1964
          %v2071 = vpack.c.b16 %v1967, %v1966
          %v2072 = vpack.c.b16 %v1969, %v1968
          %v2073 = vpack.c.b16 %v1971, %v1970
          %v2074 = vpack.c.b16 %v1973, %v1972
          %v2075 = vpack.c.b16 %v1975, %v1974
          %v2076 = vpack.c.b16 %v1977, %v1976
          %v2077 = vpack.c.b16 %v1979, %v1978
          %v2078 = vpack.c.b16 %v1981, %v1980
          %v2079 = vpack.c.b16 %v1983, %v1982
          %v2080 = vpack.c.b16 %v1985, %v1984
          %v2081 = vpack.c.b16 %v1987, %v1986
          %v2082 = vpack.c.b16 %v1989, %v1988
          %v2083 = vpack.c.b16 %v1991, %v1990
          %v2084 = vpack.c.b16 %v1993, %v1992
          %v2085 = vpack.c.b16 %v1995, %v1994
          %v2086 = vpack.c.b16 %v1997, %v1996
          %v2087 = vpack.c.b16 %v1999, %v1998
          %v2088 = vpack.c.b16 %v2001, %v2000
          %v2089 = vpack.c.b16 %v2003, %v2002
          %v2090 = vpack.c.b16 %v2005, %v2004
          %v2091 = vpack.c.b16 %v2007, %v2006
          %v2092 = vpack.c.b16 %v2009, %v2008
          %v2093 = vpack.c.b16 %v2011, %v2010
          %v2094 = vpack.c.b16 %v2013, %v2012
          %v2095 = vpack.c.b16 %v2015, %v2014
          %v2096 = vpack.c.b16 %v2017, %v2016
          %v2097 = vpack.c.b16 %v2019, %v2018
          %v2098 = vpack.c.b16 %v2021, %v2020
          %v2099 = vpack.c.b16 %v2023, %v2022
          %v2100 = vpack.c.b16 %v2025, %v2024
          %v2101 = vpack.c.b16 %v2027, %v2026
          %v2102 = vpack.c.b16 %v2029, %v2028
          %v2103 = vpack.c.b16 %v2031, %v2030
          %v2104 = vpack.c.b16 %v2033, %v2032
          %v2105 = vpack.c.b16 %v2035, %v2034
          %v2106 = vpack.c.b16 %v2037, %v2036
          %v2107 = vpack.c.b16 %v2039, %v2038
          %v2108 = vpack.c.b16 %v2041, %v2040
          %v2109 = vpack.c.b16 %v2043, %v2042
          %v2110 = vpack.c.b16 %v2045, %v2044
          %v2111 = vpack.c.b16 %v2047, %v2046
          %2176 = vmatprep.subr.bf16.mxu0 0
          %2177 = vmatpush1.bf16.msra.mxu0 %v2055
          %2178 = vmatprep.subr.bf16.mxu0 0
          %2179 = vmatpush1.bf16.msra.mxu0 %v2054
          %2180 = vmatprep.subr.bf16.mxu0 0
          %2181 = vmatpush1.bf16.msra.mxu0 %v2053
          %2182 = vmatprep.subr.bf16.mxu0 0
          %2183 = vmatpush1.bf16.msra.mxu0 %v2052
          %2184 = vmatprep.subr.bf16.mxu0 0
          %2185 = vmatpush1.bf16.msra.mxu0 %v2051
          %2186 = vmatprep.subr.bf16.mxu0 0
          %2187 = vmatpush1.bf16.msra.mxu0 %v2050
          %2188 = vmatprep.subr.bf16.mxu0 0
          %2189 = vmatpush1.bf16.msra.mxu0 %v2049
          %2190 = vmatprep.subr.bf16.mxu0 0
          %2191 = vmatpush1.bf16.msra.mxu0 %v2048
          %2192 = vmatprep.subr.bf16.mxu0 0
          %2193 = vmatpush2.bf16.msra.mxu0 %v2063
          %2194 = vmatprep.subr.bf16.mxu0 0
          %2195 = vmatpush2.bf16.msra.mxu0 %v2062
          %2196 = vmatprep.subr.bf16.mxu0 0
          %2197 = vmatpush2.bf16.msra.mxu0 %v2061
          %2198 = vmatprep.subr.bf16.mxu0 0
          %2199 = vmatpush2.bf16.msra.mxu0 %v2060
          %2200 = vmatprep.subr.bf16.mxu0 0
          %2201 = vmatpush2.bf16.msra.mxu0 %v2059
          %2202 = vmatprep.subr.bf16.mxu0 0
          %2203 = vmatpush2.bf16.msra.mxu0 %v2058
          %2204 = vmatprep.subr.bf16.mxu0 0
          %2205 = vmatpush2.bf16.msra.mxu0 %v2057
          %2206 = vmatprep.subr.bf16.mxu0 0
          %2207 = vmatpush2.bf16.msra.mxu0 %v2056
          %2208 = vmatprep.mubr.bf16.mxu0 %v1656
          %2209 = vmatmul.mubr.bf16.gmra.mxu0 %v1655
          %v2210 = vpop.f32.mrf.mxu0
          %v2211 = vadd.f32 %v1791, %v2210
          %v2212 = vpop.f32.mrf.mxu0
          %v2213 = vpop.f32.mrf.mxu0
          %v2214 = vpop.f32.mrf.mxu0
          %2215 = vdwg.mxu0
          %2216 = vmatprep.subr.bf16.mxu0 0
          %2217 = vmatpush1.bf16.msra.mxu0 %v2071
          %2218 = vmatprep.subr.bf16.mxu0 0
          %2219 = vmatpush1.bf16.msra.mxu0 %v2070
          %2220 = vmatprep.subr.bf16.mxu0 0
          %2221 = vmatpush1.bf16.msra.mxu0 %v2069
          %2222 = vmatprep.subr.bf16.mxu0 0
          %2223 = vmatpush1.bf16.msra.mxu0 %v2068
          %2224 = vmatprep.subr.bf16.mxu0 0
          %2225 = vmatpush1.bf16.msra.mxu0 %v2067
          %2226 = vmatprep.subr.bf16.mxu0 0
          %2227 = vmatpush1.bf16.msra.mxu0 %v2066
          %2228 = vmatprep.subr.bf16.mxu0 0
          %2229 = vmatpush1.bf16.msra.mxu0 %v2065
          %2230 = vmatprep.subr.bf16.mxu0 0
          %2231 = vmatpush1.bf16.msra.mxu0 %v2064
          %2232 = vmatprep.subr.bf16.mxu0 0
          %2233 = vmatpush2.bf16.msra.mxu0 %v2079
          %2234 = vmatprep.subr.bf16.mxu0 0
          %2235 = vmatpush2.bf16.msra.mxu0 %v2078
          %2236 = vmatprep.subr.bf16.mxu0 0
          %2237 = vmatpush2.bf16.msra.mxu0 %v2077
          %2238 = vmatprep.subr.bf16.mxu0 0
          %2239 = vmatpush2.bf16.msra.mxu0 %v2076
          %2240 = vmatprep.subr.bf16.mxu0 0
          %2241 = vmatpush2.bf16.msra.mxu0 %v2075
          %2242 = vmatprep.subr.bf16.mxu0 0
          %2243 = vmatpush2.bf16.msra.mxu0 %v2074
          %2244 = vmatprep.subr.bf16.mxu0 0
          %2245 = vmatpush2.bf16.msra.mxu0 %v2073
          %2246 = vmatprep.subr.bf16.mxu0 0
          %2247 = vmatpush2.bf16.msra.mxu0 %v2072
          %2248 = vmatprep.mubr.bf16.mxu0 %v1658
          %2249 = vmatmul.mubr.bf16.gmra.mxu0 %v1657
          %v2250 = vpop.f32.mrf.mxu0
          %v2251 = vadd.f32 %v2211, %v2250
          %v2252 = vpop.f32.mrf.mxu0
          %v2253 = vpop.f32.mrf.mxu0
          %v2254 = vpop.f32.mrf.mxu0
          %2255 = vdwg.mxu0
          %2256 = vmatprep.subr.bf16.mxu0 0
          %2257 = vmatpush1.bf16.msra.mxu0 %v2087
          %2258 = vmatprep.subr.bf16.mxu0 0
          %2259 = vmatpush1.bf16.msra.mxu0 %v2086
          %2260 = vmatprep.subr.bf16.mxu0 0
          %2261 = vmatpush1.bf16.msra.mxu0 %v2085
          %2262 = vmatprep.subr.bf16.mxu0 0
          %2263 = vmatpush1.bf16.msra.mxu0 %v2084
          %2264 = vmatprep.subr.bf16.mxu0 0
          %2265 = vmatpush1.bf16.msra.mxu0 %v2083
          %2266 = vmatprep.subr.bf16.mxu0 0
          %2267 = vmatpush1.bf16.msra.mxu0 %v2082
          %2268 = vmatprep.subr.bf16.mxu0 0
          %2269 = vmatpush1.bf16.msra.mxu0 %v2081
          %2270 = vmatprep.subr.bf16.mxu0 0
          %2271 = vmatpush1.bf16.msra.mxu0 %v2080
          %2272 = vmatprep.subr.bf16.mxu0 0
          %2273 = vmatpush2.bf16.msra.mxu0 %v2095
          %2274 = vmatprep.subr.bf16.mxu0 0
          %2275 = vmatpush2.bf16.msra.mxu0 %v2094
          %2276 = vmatprep.subr.bf16.mxu0 0
          %2277 = vmatpush2.bf16.msra.mxu0 %v2093
          %2278 = vmatprep.subr.bf16.mxu0 0
          %2279 = vmatpush2.bf16.msra.mxu0 %v2092
          %2280 = vmatprep.subr.bf16.mxu0 0
          %2281 = vmatpush2.bf16.msra.mxu0 %v2091
          %2282 = vmatprep.subr.bf16.mxu0 0
          %2283 = vmatpush2.bf16.msra.mxu0 %v2090
          %2284 = vmatprep.subr.bf16.mxu0 0
          %2285 = vmatpush2.bf16.msra.mxu0 %v2089
          %2286 = vmatprep.subr.bf16.mxu0 0
          %2287 = vmatpush2.bf16.msra.mxu0 %v2088
          %2288 = vmatprep.mubr.bf16.mxu0 %v1660
          %2289 = vmatmul.mubr.bf16.gmra.mxu0 %v1659
          %v2290 = vpop.f32.mrf.mxu0
          %v2291 = vadd.f32 %v2251, %v2290
          %v2292 = vpop.f32.mrf.mxu0
          %v2293 = vpop.f32.mrf.mxu0
          %v2294 = vpop.f32.mrf.mxu0
          %2295 = vdwg.mxu0
          %2296 = vmatprep.subr.bf16.mxu0 0
          %2297 = vmatpush1.bf16.msra.mxu0 %v2103
          %2298 = vmatprep.subr.bf16.mxu0 0
          %2299 = vmatpush1.bf16.msra.mxu0 %v2102
          %2300 = vmatprep.subr.bf16.mxu0 0
          %2301 = vmatpush1.bf16.msra.mxu0 %v2101
          %2302 = vmatprep.subr.bf16.mxu0 0
          %2303 = vmatpush1.bf16.msra.mxu0 %v2100
          %2304 = vmatprep.subr.bf16.mxu0 0
          %2305 = vmatpush1.bf16.msra.mxu0 %v2099
          %2306 = vmatprep.subr.bf16.mxu0 0
          %2307 = vmatpush1.bf16.msra.mxu0 %v2098
          %2308 = vmatprep.subr.bf16.mxu0 0
          %2309 = vmatpush1.bf16.msra.mxu0 %v2097
          %2310 = vmatprep.subr.bf16.mxu0 0
          %2311 = vmatpush1.bf16.msra.mxu0 %v2096
          %2312 = vmatprep.subr.bf16.mxu0 0
          %2313 = vmatpush2.bf16.msra.mxu0 %v2111
          %2314 = vmatprep.subr.bf16.mxu0 0
          %2315 = vmatpush2.bf16.msra.mxu0 %v2110
          %2316 = vmatprep.subr.bf16.mxu0 0
          %2317 = vmatpush2.bf16.msra.mxu0 %v2109
          %2318 = vmatprep.subr.bf16.mxu0 0
          %2319 = vmatpush2.bf16.msra.mxu0 %v2108
          %2320 = vmatprep.subr.bf16.mxu0 0
          %2321 = vmatpush2.bf16.msra.mxu0 %v2107
          %2322 = vmatprep.subr.bf16.mxu0 0
          %2323 = vmatpush2.bf16.msra.mxu0 %v2106
          %2324 = vmatprep.subr.bf16.mxu0 0
          %2325 = vmatpush2.bf16.msra.mxu0 %v2105
          %2326 = vmatprep.subr.bf16.mxu0 0
          %2327 = vmatpush2.bf16.msra.mxu0 %v2104
          %2328 = vmatprep.mubr.bf16.mxu0 %v1662
          %2329 = vmatmul.mubr.bf16.gmra.mxu0 %v1661
          %v2330 = vpop.f32.mrf.mxu0
          %v2331 = vadd.f32 %v2291, %v2330
          %v2332 = vpop.f32.mrf.mxu0
          %v2333 = vpop.f32.mrf.mxu0
          %v2334 = vpop.f32.mrf.mxu0
          %2335 = vdwg.mxu0
          %v2336 = vtanh.pop %v2331
          %2337 = vst [vmem:[%s335] sm:$0x1] %v2336
        $region64: #{googlenetv3_forward.1} parent=51 // pred_fallthru
          _
        %s2338 = sand.u32 %s221, 1
        %s2339 = scalar_lea.sflag [#allocation5], %s2338
        %s2340 = sand.u32 %s221, 1
        %s2341 = scalar_lea.vmem [#allocation6], %s2340
        // Predicated region
        $region65: #{googlenetv3_forward.1} parent=51 // pred_check
          %p2342 = pneg %p231
        $region66: #{googlenetv3_forward.1} parent=51 // pred_check_branch
          %2344 = sbr.rel (%p2342) target = $region68
        $region67: #{googlenetv3_forward.1} parent=51 // pred_region
          %s2346 = ssub.s32 16, 16
          %2347 = vsyncadd %s2339, %s2346
          %s2348 = smul.addr %s27, 16
          %s2349 = scalar_lea.hbm %s8, %s2348
          %s2351 = sshll.u32 %s2341, 4
          %s2352 = int_to_ptr.vmem [resolvable:$true] %s2351
          %2354 = dma.vmem_to_hbm [thread:$0]  %s2352, 16, %s2349, %s2339
        $region68: #{googlenetv3_forward.1} parent=51 // pred_fallthru
          _
      $region52: #{googlenetv3_forward.1} parent=5 // pred_fallthru
        _
      %p2355 = scmp.le.s32.totalorder 2, %s18
      // Predicated region
      $region69: #{googlenetv3_forward.1} parent=5 // pred_check
        %p2356 = pneg %p2355
      $region70: #{googlenetv3_forward.1} parent=5 // pred_check_branch
        %2358 = sbr.rel (%p2356) target = $region72
      $region71: #{googlenetv3_forward.1} parent=5 // pred_region
        %s2359 = ssub.s32 %s18, 2
        // Predicated region
        $region73: #{googlenetv3_forward.1} parent=71 // pred_check
          %p2360 = pneg %p237
        $region74: #{googlenetv3_forward.1} parent=71 // pred_check_branch
          %2362 = sbr.rel (%p2360) target = $region76
        $region75: #{googlenetv3_forward.1} parent=71 // pred_region
          %s2363 = sand.u32 %s222, 1
          %s2364 = scalar_lea.sflag [#allocation5], %s2363
          %s2365 = sand.u32 %s222, 1
          %s2366 = scalar_lea.vmem [#allocation6], %s2365
          %2367 = dma.done %s2364, 16
        $region76: #{googlenetv3_forward.1} parent=71 // pred_fallthru
          _
      $region72: #{googlenetv3_forward.1} parent=5 // pred_fallthru
        _
    $region6: #{googlenetv3_forward.1} parent=1 // loop_footer
      %s22 = sadd.s32 1, %s18
    $region7: #{googlenetv3_forward.1} parent=1 // loop_footer_branch
      %17 = sbr.rel target = $region3
    $region8: #{googlenetv3_forward.1} parent=1 // loop_exit
      _
    %2368 = vsyncpa [#allocation4], 1
    %s2369 = scalar_lea.sflag [#allocation4], 1
    %2370 = vsyncpa %s2369, 1
    %2371 = vsyncpa [#allocation5], 1
    %s2372 = scalar_lea.sflag [#allocation5], 1
    %2373 = vsyncpa %s2372, 1

</llo_original>
